<compile_context>
chip_gen: v7x
topology: tpu7x:2x2x1
jax: 0.10.0
libtpu: 0.0.40
codegen_flags: <defaults>
</compile_context>

<pallas_src>
import math
import functools

import jax
import jax.numpy as jnp
from jax.experimental import pallas as pl
from jax.experimental.pallas import tpu as pltpu


# ----------------------------------------------------------------------------
# Kernels
# ----------------------------------------------------------------------------

def _sdpa_attn_kernel(*refs, inv_sqrt_dk, has_mask, use_vpu):
    """Full path: writes both context and the attention matrix."""
    if has_mask:
        q_ref, k_ref, v_ref, m_ref, ctx_ref, attn_ref = refs
    else:
        q_ref, k_ref, v_ref, ctx_ref, attn_ref = refs
        m_ref = None

    if use_vpu:
        # Tiny per-head shapes: tb tiny MXU matmuls would each waste >95% of
        # a 256-wide MXU and pay push/pop latency; VPU mul + XLU reduce wins.
        q = q_ref[...].astype(jnp.float32) * inv_sqrt_dk
        k = k_ref[...].astype(jnp.float32)
        scores = jnp.sum(q[:, :, None, :] * k[:, None, :, :], axis=-1)
    else:
        # Fold 1/sqrt(dk) into Q (tq*dk mults instead of tq*Sk) and contract
        # d_k directly (no XLU transpose of K); f32 MXU accumulation.
        q = q_ref[...] * inv_sqrt_dk
        scores = jnp.einsum("bqd,bkd->bqk", q, k_ref[...],
                            preferred_element_type=jnp.float32)

    # Non-stabilized exp, exactly like the PyTorch module (the single EUP
    # slot is the compute ceiling for small d_k; keep extra work off it).
    scores = jnp.exp(scores)
    if has_mask:
        scores = scores * m_ref[...].astype(jnp.float32)

    denom = jnp.sum(scores, axis=-1, keepdims=True) + 1e-8
    inv = pl.reciprocal(denom, approx=True)
    inv = inv * (2.0 - denom * inv)          # one Newton step -> full f32
    attn = scores * inv

    v = v_ref[...]
    if use_vpu:
        ctx = jnp.sum(attn[:, :, :, None] * v.astype(jnp.float32)[:, None, :, :],
                      axis=2)
    else:
        ctx = jnp.einsum("bqk,bkd->bqd", attn.astype(v.dtype), v,
                         preferred_element_type=jnp.float32)

    ctx_ref[...] = ctx.astype(ctx_ref.dtype)
    attn_ref[...] = attn.astype(attn_ref.dtype)


def _sdpa_ctx_kernel(*refs, inv_sqrt_dk, has_mask, use_vpu, sk_total, tk):
    """Context-only path: Sk is tiled; accumulate ctx and the row-sum
    denominator over k tiles, normalize on the last tile."""
    if has_mask:
        q_ref, k_ref, v_ref, m_ref, ctx_ref, acc_ref, den_ref = refs
    else:
        q_ref, k_ref, v_ref, ctx_ref, acc_ref, den_ref = refs
        m_ref = None

    kidx = pl.program_id(2)

    @pl.when(kidx == 0)
    def _():
        acc_ref[...] = jnp.zeros_like(acc_ref)
        den_ref[...] = jnp.zeros_like(den_ref)

    k = k_ref[...]
    v = v_ref[...]

    if use_vpu:
        q = q_ref[...].astype(jnp.float32) * inv_sqrt_dk
        scores = jnp.sum(q[:, :, None, :] * k.astype(jnp.float32)[:, None, :, :],
                         axis=-1)
    else:
        q = q_ref[...] * inv_sqrt_dk
        scores = jnp.einsum("bqd,bkd->bqk", q, k,
                            preferred_element_type=jnp.float32)

    scores = jnp.exp(scores)
    if has_mask:
        scores = scores * m_ref[...].astype(jnp.float32)

    if sk_total % tk != 0:
        # Partial last key tile: zero the padded columns (and matching V rows)
        # so stale VMEM (possibly inf/NaN) never reaches the running sums.
        col = jax.lax.broadcasted_iota(jnp.int32, scores.shape, 2)
        scores = jnp.where(kidx * tk + col < sk_total, scores, 0.0)
        row = jax.lax.broadcasted_iota(jnp.int32, v.shape, 1)
        v = jnp.where(kidx * tk + row < sk_total, v, jnp.zeros_like(v))

    den_ref[...] += jnp.sum(scores, axis=-1, keepdims=True)
    if use_vpu:
        acc_ref[...] += jnp.sum(
            scores[:, :, :, None] * v.astype(jnp.float32)[:, None, :, :], axis=2)
    else:
        acc_ref[...] += jnp.einsum("bqk,bkd->bqd", scores.astype(v.dtype), v,
                                   preferred_element_type=jnp.float32)

    @pl.when(kidx == pl.num_programs(2) - 1)
    def _():
        denom = den_ref[...] + 1e-8
        inv = pl.reciprocal(denom, approx=True)
        inv = inv * (2.0 - denom * inv)
        ctx_ref[...] = (acc_ref[...] * inv).astype(ctx_ref.dtype)


# ----------------------------------------------------------------------------
# Tile selection / VMEM accounting
# ----------------------------------------------------------------------------

def _vmem_capacity_bytes():
    try:
        cap = getattr(pltpu.get_tpu_info(), "vmem_capacity_bytes", None)
        if cap:
            return int(cap)
    except Exception:
        pass
    return 64 * 1024 * 1024        # conservative: v7x has 64 MiB per TensorCore


def _attn_vmem_bytes(tb, tq, Sk, dk, dv, in_isz, mask_isz, use_vpu):
    b = 2 * tb * Sk * (dk + dv) * in_isz        # K,V blocks (double-buffered)
    b += 2 * tb * tq * dk * in_isz              # Q blocks
    b += 2 * tb * tq * dv * in_isz              # ctx out blocks
    b += 2 * tb * tq * Sk * in_isz              # attn out blocks (input dtype)
    if mask_isz:
        b += 2 * tb * tq * Sk * mask_isz        # mask blocks
    b += 2 * tb * tq * Sk * 4                   # live f32 scores + attn
    if use_vpu:
        b += tb * tq * Sk * max(dk, dv) * 4     # broadcast-mul intermediate
    return b


def _ctx_vmem_bytes(tb, tq, tk, dk, dv, in_isz, mask_isz, use_vpu):
    b = 2 * tb * tk * (dk + dv) * in_isz        # K,V blocks (double-buffered)
    b += 2 * tb * tq * dk * in_isz              # Q blocks
    b += 2 * tb * tq * dv * in_isz              # ctx out blocks
    if mask_isz:
        b += 2 * tb * tq * tk * mask_isz        # mask blocks
    b += tb * tq * (max(dv, 128) + 128) * 4     # acc + denom scratch (padded)
    b += tb * tq * tk * 4                       # live f32 scores
    if use_vpu:
        b += tb * tq * tk * max(dk, dv) * 4
    return b


_TQ_CANDIDATES = (1024, 768, 512, 384, 256, 192, 128, 96, 64, 48, 32, 16, 8)


def _split_sq(Sq):
    """tq giving exactly 2 q-tiles (multiple of 8)."""
    return max(8, (((Sq + 1) // 2 + 7) // 8) * 8)


def _pick_tb(BH, nq, budget, nbytes_fn):
    tb = 1
    for cand in range(min(BH, 128), 1, -1):
        if BH % cand:
            continue
        if (BH // cand) * nq < 2:         # keep >= 2 parallel grid steps (v7x)
            continue
        if nbytes_fn(cand) > budget:
            continue
        tb = cand
        break
    return tb


def _pick_tiles_attn(BH, Sq, Sk, dk, dv, in_isz, mask_isz, budget):
    def use_vpu(tq):
        return tq <= 32 and Sk <= 32 and dk <= 64 and dv <= 64

    def nbytes(tb, tq):
        return _attn_vmem_bytes(tb, tq, Sk, dk, dv, in_isz, mask_isz, use_vpu(tq))

    # q tile: as big as the budget allows (amortize ~0.35us/step overhead,
    # fill the 256-wide MXU); whole Sq when it fits.
    if nbytes(1, Sq) <= budget:
        tq = Sq
    else:
        tq = 8
        for cand in _TQ_CANDIDATES:
            if cand <= Sq and nbytes(1, cand) <= budget:
                tq = cand
                break

    nq = -(-Sq // tq)
    if BH == 1 and nq == 1 and Sq >= 16:    # never leave a TensorCore idle
        tq = _split_sq(Sq)
        nq = -(-Sq // tq)

    tb = _pick_tb(BH, nq, budget, lambda c: nbytes(c, tq))
    return tb, tq, use_vpu(tq)


def _pick_tiles_ctx(BH, Sq, Sk, dk, dv, in_isz, mask_isz, budget):
    def use_vpu(tq, tk):
        return tq <= 32 and tk <= 32 and dk <= 64 and dv <= 64

    def nbytes(tb, tq, tk):
        return _ctx_vmem_bytes(tb, tq, tk, dk, dv, in_isz, mask_isz,
                               use_vpu(tq, tk))

    # key tile: whole Sk when it comfortably fits (single k step), otherwise a
    # 512-wide tile (multiple of 128 keeps the mask block's minor dim legal).
    if Sk <= 2048 and nbytes(1, 8, Sk) <= budget:
        tk = Sk
    else:
        tk = min(Sk, 512)

    if nbytes(1, Sq, tk) <= budget:
        tq = Sq
    else:
        tq = 8
        for cand in _TQ_CANDIDATES:
            if cand <= Sq and nbytes(1, cand, tk) <= budget:
                tq = cand
                break

    nq = -(-Sq // tq)
    if BH == 1 and nq == 1 and Sq >= 16:
        tq = _split_sq(Sq)
        nq = -(-Sq // tq)

    tb = _pick_tb(BH, nq, budget, lambda c: nbytes(c, tq, tk))
    return tb, tq, tk, use_vpu(tq, tk)


# ----------------------------------------------------------------------------
# Wrapper
# ----------------------------------------------------------------------------

def scaled_dot_product_attention(Q, K, V, attn_mask=None, *,
                                 return_attn=True, block_sizes=None):
    """Returns (context, attn) like the PyTorch module.  With
    return_attn=False, returns (context, None) and skips the attn writeback
    entirely (Sk-tiled accumulation path)."""
    B, H, Sq, dk = Q.shape
    Sk = K.shape[2]
    dv = V.shape[3]
    BH = B * H

    Qf = Q.reshape(BH, Sq, dk)
    Kf = K.reshape(BH, Sk, dk)
    Vf = V.reshape(BH, Sk, dv)
    has_mask = attn_mask is not None
    # Mask is DMA'd in the caller's dtype (bf16/int8/... welcome), cast in-kernel.
    Mf = attn_mask.reshape(BH, Sq, Sk) if has_mask else None

    in_isz = Q.dtype.itemsize
    mask_isz = Mf.dtype.itemsize if has_mask else 0

    cap = _vmem_capacity_bytes()
    budget = int(0.55 * cap)              # ~70 MiB on 128 MiB parts, ~35 on v7x
    limit_cap = int(0.65 * cap)           # scoped-VMEM ceiling we ever request
    inv_sqrt_dk = 1.0 / math.sqrt(dk)

    if return_attn:
        if block_sizes is not None:
            tb = int(block_sizes.get("tb", 1))
            tq = int(block_sizes.get("tq", Sq))
            use_vpu = tq <= 32 and Sk <= 32 and dk <= 64 and dv <= 64
        else:
            tb, tq, use_vpu = _pick_tiles_attn(BH, Sq, Sk, dk, dv,
                                               in_isz, mask_isz, budget)
        grid = (BH // tb, pl.cdiv(Sq, tq))

        kernel = functools.partial(_sdpa_attn_kernel, inv_sqrt_dk=inv_sqrt_dk,
                                   has_mask=has_mask, use_vpu=use_vpu)
        in_specs = [
            pl.BlockSpec((tb, tq, dk), lambda b, q: (b, q, 0)),
            # K/V index maps ignore the q-tile index -> resident across q.
            pl.BlockSpec((tb, Sk, dk), lambda b, q: (b, 0, 0)),
            pl.BlockSpec((tb, Sk, dv), lambda b, q: (b, 0, 0)),
        ]
        args = [Qf, Kf, Vf]
        if has_mask:
            in_specs.append(pl.BlockSpec((tb, tq, Sk), lambda b, q: (b, q, 0)))
            args.append(Mf)
        out_specs = [
            pl.BlockSpec((tb, tq, dv), lambda b, q: (b, q, 0)),
            pl.BlockSpec((tb, tq, Sk), lambda b, q: (b, q, 0)),
        ]

        need = _attn_vmem_bytes(tb, tq, Sk, dk, dv, in_isz, mask_isz, use_vpu)
        vmem_limit = int(min(limit_cap,
                             max(32 * 1024 * 1024, int(1.25 * need) + (2 << 20))))

        ctx, attn = pl.pallas_call(
            kernel,
            out_shape=(
                jax.ShapeDtypeStruct((BH, Sq, dv), Q.dtype),
                jax.ShapeDtypeStruct((BH, Sq, Sk), Q.dtype),   # input dtype
            ),
            grid_spec=pltpu.PrefetchScalarGridSpec(
                num_scalar_prefetch=0, grid=grid,
                in_specs=in_specs, out_specs=out_specs),
            compiler_params=pltpu.CompilerParams(
                dimension_semantics=("parallel", "parallel"),
                vmem_limit_bytes=vmem_limit),
        )(*args)
        return ctx.reshape(B, H, Sq, dv), attn.reshape(B, H, Sq, Sk)

    # ---- context-only path: Sk tiled, no attn writeback --------------------
    if block_sizes is not None:
        tb = int(block_sizes.get("tb", 1))
        tq = int(block_sizes.get("tq", min(Sq, 512)))
        tk = int(block_sizes.get("tk", Sk))
        use_vpu = tq <= 32 and tk <= 32 and dk <= 64 and dv <= 64
    else:
        tb, tq, tk, use_vpu = _pick_tiles_ctx(BH, Sq, Sk, dk, dv,
                                              in_isz, mask_isz, budget)
    grid = (BH // tb, pl.cdiv(Sq, tq), pl.cdiv(Sk, tk))

    kernel = functools.partial(_sdpa_ctx_kernel, inv_sqrt_dk=inv_sqrt_dk,
                               has_mask=has_mask, use_vpu=use_vpu,
                               sk_total=Sk, tk=tk)
    in_specs = [
        pl.BlockSpec((tb, tq, dk), lambda b, q, k: (b, q, 0)),
        pl.BlockSpec((tb, tk, dk), lambda b, q, k: (b, k, 0)),
        pl.BlockSpec((tb, tk, dv), lambda b, q, k: (b, k, 0)),
    ]
    args = [Qf, Kf, Vf]
    if has_mask:
        in_specs.append(pl.BlockSpec((tb, tq, tk), lambda b, q, k: (b, q, k)))
        args.append(Mf)
    out_specs = pl.BlockSpec((tb, tq, dv), lambda b, q, k: (b, q, 0))
    scratch = [pltpu.VMEM((tb, tq, dv), jnp.float32),
               pltpu.VMEM((tb, tq, 1), jnp.float32)]

    need = _ctx_vmem_bytes(tb, tq, tk, dk, dv, in_isz, mask_isz, use_vpu)
    vmem_limit = int(min(limit_cap,
                         max(32 * 1024 * 1024, int(1.25 * need) + (2 << 20))))

    ctx = pl.pallas_call(
        kernel,
        out_shape=jax.ShapeDtypeStruct((BH, Sq, dv), Q.dtype),
        grid_spec=pltpu.PrefetchScalarGridSpec(
            num_scalar_prefetch=0, grid=grid,
            in_specs=in_specs, out_specs=out_specs,
            scratch_shapes=scratch),
        compiler_params=pltpu.CompilerParams(
            dimension_semantics=("parallel", "parallel", "arbitrary"),
            vmem_limit_bytes=vmem_limit),
    )(*args)
    return ctx.reshape(B, H, Sq, dv), None


# ----------------------------------------------------------------------------
# Reference + tests
# ----------------------------------------------------------------------------

def _reference(Q, K, V, attn_mask=None):
    dk = Q.shape[-1]
    scores = jnp.einsum("bhqd,bhkd->bhqk", Q, K) / math.sqrt(dk)
    scores = jnp.exp(scores)
    if attn_mask is not None:
        scores = scores * attn_mask.astype(scores.dtype)
    attn = scores / (jnp.sum(scores, axis=-1, keepdims=True) + 1e-8)
    context = jnp.einsum("bhqk,bhkd->bhqd", attn, V)
    return context, attn


if __name__ == "__main__":
    key = jax.random.PRNGKey(0)
    kq, kk, kv, km = jax.random.split(key, 4)

    # ---- tiny recommender-sized heads (VPU path, tb batching) --------------
    B, H, S, d_k = 2, 2, 8, 32
    Q = jax.random.normal(kq, (B, H, S, d_k), dtype=jnp.float32)
    K = jax.random.normal(kk, (B, H, S, d_k), dtype=jnp.float32)
    V = jax.random.normal(kv, (B, H, S, d_k), dtype=jnp.float32)
    mask = (jax.random.uniform(km, (B, H, S, S)) > 0.3).astype(jnp.float32)

    ctx, attn = scaled_dot_product_attention(Q, K, V, mask)
    jax.block_until_ready((ctx, attn))
    ctx_r, attn_r = _reference(Q, K, V, mask)
    assert jnp.allclose(ctx, ctx_r, atol=1e-4, rtol=1e-4)
    assert jnp.allclose(attn, attn_r, atol=1e-5, rtol=1e-4)

    ctx, attn = scaled_dot_product_attention(Q, K, V, None)
    jax.block_until_ready((ctx, attn))
    ctx_r, attn_r = _reference(Q, K, V, None)
    assert jnp.allclose(ctx, ctx_r, atol=1e-4, rtol=1e-4)
    assert jnp.allclose(attn, attn_r, atol=1e-5, rtol=1e-4)

    # context-only variant (no attn writeback)
    ctx_only, none_attn = scaled_dot_product_attention(Q, K, V, None,
                                                       return_attn=False)
    jax.block_until_ready(ctx_only)
    assert none_attn is None
    assert jnp.allclose(ctx_only, ctx_r, atol=1e-4, rtol=1e-4)

    # ---- larger heads (MXU einsum path, low-precision mask) ----------------
    k2 = jax.random.split(jax.random.PRNGKey(0), 4)
    B2, H2, S2, d2 = 1, 2, 256, 64
    Q2 = jax.random.normal(k2[0], (B2, H2, S2, d2), dtype=jnp.float32)
    K2 = jax.random.normal(k2[1], (B2, H2, S2, d2), dtype=jnp.float32)
    V2 = jax.random.normal(k2[2], (B2, H2, S2, d2), dtype=jnp.float32)
    mask2 = (jax.random.uniform(k2[3], (B2, H2, S2, S2)) > 0.2).astype(jnp.bfloat16)

    ctx2, attn2 = scaled_dot_product_attention(Q2, K2, V2, mask2)
    jax.block_until_ready((ctx2, attn2))
    ctx2_r, attn2_r = _reference(Q2, K2, V2, mask2)
    assert jnp.allclose(ctx2, ctx2_r, atol=1e-4, rtol=1e-4)
    assert jnp.allclose(attn2, attn2_r, atol=1e-5, rtol=1e-4)

    # ---- context-only with forced Sk tiling (partial last k tile) ----------
    k3 = jax.random.split(jax.random.PRNGKey(0), 4)
    B3, H3, Sq3, Sk3, d3 = 1, 2, 64, 192, 32
    Q3 = jax.random.normal(k3[0], (B3, H3, Sq3, d3), dtype=jnp.float32)
    K3 = jax.random.normal(k3[1], (B3, H3, Sk3, d3), dtype=jnp.float32)
    V3 = jax.random.normal(k3[2], (B3, H3, Sk3, d3), dtype=jnp.float32)
    mask3 = (jax.random.uniform(k3[3], (B3, H3, Sq3, Sk3)) > 0.3).astype(jnp.float32)

    ctx3, _ = scaled_dot_product_attention(
        Q3, K3, V3, mask3, return_attn=False,
        block_sizes={"tb": 1, "tq": 64, "tk": 128})   # 2 k-tiles, last partial
    jax.block_until_ready(ctx3)
    ctx3_r, _ = _reference(Q3, K3, V3, mask3)
    assert jnp.allclose(ctx3, ctx3_r, atol=1e-4, rtol=1e-4)

    print("KERNEL_OK")
</pallas_src>

<mosaic_0001>
module attributes {stable_mosaic.version = 11 : i64} {
  func.func @_sdpa_attn_kernel(%arg0: i32, %arg1: i32, %arg2: memref<2x8x32xf32, #tpu.memory_space<vmem>>, %arg3: memref<2x8x32xf32, #tpu.memory_space<vmem>>, %arg4: memref<2x8x32xf32, #tpu.memory_space<vmem>>, %arg5: memref<2x8x8xf32, #tpu.memory_space<vmem>>, %arg6: memref<2x8x32xf32, #tpu.memory_space<vmem>>, %arg7: memref<2x8x8xf32, #tpu.memory_space<vmem>>) attributes {dimension_semantics = [#tpu.dimension_semantics<parallel>, #tpu.dimension_semantics<parallel>], iteration_bounds = array<i64: 2, 1>, scalar_prefetch = 0 : i64, scratch_operands = 0 : i64, tpu.core_type = #tpu.core_type<tc>, window_params = [{transform_indices = @transform_0, window_bounds = array<i64: 2, 8, 32>}, {transform_indices = @transform_1, window_bounds = array<i64: 2, 8, 32>}, {transform_indices = @transform_2, window_bounds = array<i64: 2, 8, 32>}, {transform_indices = @transform_3, window_bounds = array<i64: 2, 8, 8>}, {transform_indices = @transform_4, window_bounds = array<i64: 2, 8, 32>}, {transform_indices = @transform_5, window_bounds = array<i64: 2, 8, 8>}]} {
    %c0 = arith.constant 0 : index
    %c0_0 = arith.constant 0 : index
    %c0_1 = arith.constant 0 : index
    %0 = vector.load %arg2[%c0, %c0_0, %c0_1] : memref<2x8x32xf32, #tpu.memory_space<vmem>>, vector<2x8x32xf32>
    %cst = arith.constant 0.176776692 : f32
    %1 = vector.broadcast %cst : f32 to vector<2x8x32xf32>
    %2 = arith.mulf %0, %1 : vector<2x8x32xf32>
    %c0_2 = arith.constant 0 : index
    %c0_3 = arith.constant 0 : index
    %c0_4 = arith.constant 0 : index
    %3 = vector.load %arg3[%c0_2, %c0_3, %c0_4] : memref<2x8x32xf32, #tpu.memory_space<vmem>>, vector<2x8x32xf32>
    %4 = vector.shape_cast %2 : vector<2x8x32xf32> to vector<2x8x1x32xf32>
    %5 = vector.shape_cast %3 : vector<2x8x32xf32> to vector<2x1x8x32xf32>
    %6 = vector.broadcast %4 : vector<2x8x1x32xf32> to vector<2x8x8x32xf32>
    %7 = vector.broadcast %5 : vector<2x1x8x32xf32> to vector<2x8x8x32xf32>
    %8 = arith.mulf %6, %7 : vector<2x8x8x32xf32>
    %cst_5 = arith.constant dense<0.000000e+00> : vector<2x8x8xf32>
    %9 = vector.multi_reduction <add>, %8, %cst_5 [3] : vector<2x8x8x32xf32> to vector<2x8x8xf32>
    %10 = math.exp %9 : vector<2x8x8xf32>
    %c0_6 = arith.constant 0 : index
    %c0_7 = arith.constant 0 : index
    %c0_8 = arith.constant 0 : index
    %11 = vector.load %arg5[%c0_6, %c0_7, %c0_8] : memref<2x8x8xf32, #tpu.memory_space<vmem>>, vector<2x8x8xf32>
    %12 = arith.mulf %10, %11 : vector<2x8x8xf32>
    %cst_9 = arith.constant dense<0.000000e+00> : vector<2x8xf32>
    %13 = vector.multi_reduction <add>, %12, %cst_9 [2] : vector<2x8x8xf32> to vector<2x8xf32>
    %14 = vector.shape_cast %13 : vector<2x8xf32> to vector<2x8x1xf32>
    %cst_10 = arith.constant 9.99999993E-9 : f32
    %15 = vector.broadcast %cst_10 : f32 to vector<2x8x1xf32>
    %16 = arith.addf %14, %15 : vector<2x8x1xf32>
    %17 = tpu.reciprocal %16 {approx = true} : vector<2x8x1xf32> -> vector<2x8x1xf32>
    %18 = arith.mulf %16, %17 : vector<2x8x1xf32>
    %cst_11 = arith.constant 2.000000e+00 : f32
    %19 = vector.broadcast %cst_11 : f32 to vector<2x8x1xf32>
    %20 = arith.subf %19, %18 : vector<2x8x1xf32>
    %21 = arith.mulf %17, %20 : vector<2x8x1xf32>
    %22 = vector.broadcast %21 : vector<2x8x1xf32> to vector<2x8x8xf32>
    %23 = arith.mulf %12, %22 : vector<2x8x8xf32>
    %c0_12 = arith.constant 0 : index
    %c0_13 = arith.constant 0 : index
    %c0_14 = arith.constant 0 : index
    %24 = vector.load %arg4[%c0_12, %c0_13, %c0_14] : memref<2x8x32xf32, #tpu.memory_space<vmem>>, vector<2x8x32xf32>
    %25 = vector.shape_cast %23 : vector<2x8x8xf32> to vector<2x8x8x1xf32>
    %26 = vector.shape_cast %24 : vector<2x8x32xf32> to vector<2x1x8x32xf32>
    %27 = vector.broadcast %25 : vector<2x8x8x1xf32> to vector<2x8x8x32xf32>
    %28 = vector.broadcast %26 : vector<2x1x8x32xf32> to vector<2x8x8x32xf32>
    %29 = arith.mulf %27, %28 : vector<2x8x8x32xf32>
    %cst_15 = arith.constant dense<0.000000e+00> : vector<2x8x32xf32>
    %30 = vector.multi_reduction <add>, %29, %cst_15 [2] : vector<2x8x8x32xf32> to vector<2x8x32xf32>
    %c0_16 = arith.constant 0 : index
    %c0_17 = arith.constant 0 : index
    %c0_18 = arith.constant 0 : index
    %31 = vector.load %arg6[%c0_16, %c0_17, %c0_18] : memref<2x8x32xf32, #tpu.memory_space<vmem>>, vector<2x8x32xf32>
    tpu.vector_store %arg6[%c0_16, %c0_17, %c0_18], %30 {strides = array<i32>} : memref<2x8x32xf32, #tpu.memory_space<vmem>>, vector<2x8x32xf32>,
    %c0_19 = arith.constant 0 : index
    %c0_20 = arith.constant 0 : index
    %c0_21 = arith.constant 0 : index
    %32 = vector.load %arg7[%c0_19, %c0_20, %c0_21] : memref<2x8x8xf32, #tpu.memory_space<vmem>>, vector<2x8x8xf32>
    tpu.vector_store %arg7[%c0_19, %c0_20, %c0_21], %23 {strides = array<i32>} : memref<2x8x8xf32, #tpu.memory_space<vmem>>, vector<2x8x8xf32>,
    return
  }
  func.func @transform_0(%arg0: i32, %arg1: i32) -> (i32, i32, i32) {
    %c0_i32 = arith.constant 0 : i32
    %c0_i32_0 = arith.constant 0 : i32
    return %arg0, %arg1, %c0_i32 : i32, i32, i32
  }
  func.func @transform_1(%arg0: i32, %arg1: i32) -> (i32, i32, i32) {
    %c0_i32 = arith.constant 0 : i32
    %c0_i32_0 = arith.constant 0 : i32
    %c0_i32_1 = arith.constant 0 : i32
    return %arg0, %c0_i32, %c0_i32_0 : i32, i32, i32
  }
  func.func @transform_2(%arg0: i32, %arg1: i32) -> (i32, i32, i32) {
    %c0_i32 = arith.constant 0 : i32
    %c0_i32_0 = arith.constant 0 : i32
    %c0_i32_1 = arith.constant 0 : i32
    return %arg0, %c0_i32, %c0_i32_0 : i32, i32, i32
  }
  func.func @transform_3(%arg0: i32, %arg1: i32) -> (i32, i32, i32) {
    %c0_i32 = arith.constant 0 : i32
    %c0_i32_0 = arith.constant 0 : i32
    return %arg0, %arg1, %c0_i32 : i32, i32, i32
  }
  func.func @transform_4(%arg0: i32, %arg1: i32) -> (i32, i32, i32) {
    %c0_i32 = arith.constant 0 : i32
    %c0_i32_0 = arith.constant 0 : i32
    return %arg0, %arg1, %c0_i32 : i32, i32, i32
  }
  func.func @transform_5(%arg0: i32, %arg1: i32) -> (i32, i32, i32) {
    %c0_i32 = arith.constant 0 : i32
    %c0_i32_0 = arith.constant 0 : i32
    return %arg0, %arg1, %c0_i32 : i32, i32, i32
  }
}

</mosaic_0001>

<llo_original>
// kernel: tpu_custom_call.1
$region0: #{tpu_custom_call.1}
  #allocation0 [shape = 'u32[]', space=smem, size = 0x4, offset = 0x4, fixed_abs, tag = 'smem constant byte address 0x4 - core index']
  #allocation1 [shape = 'u32[144,128]{1,0:T(1,128)}', space=vmem, size = 0x12000, scoped, tag = 'internal scratch']
  %s0 = inlined_call_operand.hbm [shape: f32[4,8,32], index: 0, kind: input, shape index: {}]
  %s1 = inlined_call_operand.hbm [shape: f32[4,8,32], index: 1, kind: input, shape index: {}]
  %s2 = inlined_call_operand.hbm [shape: f32[4,8,32], index: 2, kind: input, shape index: {}]
  %s3 = inlined_call_operand.hbm [shape: f32[4,8,8], index: 3, kind: input, shape index: {}]
  %s4 = inlined_call_operand.hbm [shape: f32[4,8,32], index: 4, kind: output, shape index: {0}]
  %s5 = inlined_call_operand.hbm [shape: f32[4,8,8], index: 5, kind: output, shape index: {1}]
  %6 = xla_tuple %s4, %s5
  %s7 = sld [smem:[#allocation0]]
  $region73: #{tpu_custom_call.1} parent=0
    _
  %s9 = ssub.s32 1, %s7
  %s10 = scalar_select 0, %s9, %s7
  $region1: #{tpu_custom_call.1} parent=0
    #allocation2 [shape = 'u8[16384]{0}', space=vmem, size = 0x4000, scoped, tag = 'input window, operand 0']
    #allocation3 [shape = 's32[2]{0}', space=sflag, size = 0x8, scoped, tag = 'scoped memory for tpu_custom_call.1']
    #allocation4 [shape = 's32[2]{0}', space=sflag, size = 0x8, scoped, tag = 'scoped memory for tpu_custom_call.1']
    #allocation5 [shape = 'u8[16384]{0}', space=vmem, size = 0x4000, scoped, tag = 'input window, operand 1']
    #allocation6 [shape = 's32[2]{0}', space=sflag, size = 0x8, scoped, tag = 'scoped memory for tpu_custom_call.1']
    #allocation7 [shape = 'u8[16384]{0}', space=vmem, size = 0x4000, scoped, tag = 'input window, operand 2']
    #allocation8 [shape = 'u8[16384]{0}', space=vmem, size = 0x4000, scoped, tag = 'input window, operand 3']
    #allocation9 [shape = 's32[2]{0}', space=sflag, size = 0x8, scoped, tag = 'scoped memory for tpu_custom_call.1']
    #allocation10 [shape = 'u8[16384]{0}', space=vmem, size = 0x4000, scoped, tag = 'output window, operand 0']
    #allocation11 [shape = 'u8[16384]{0}', space=vmem, size = 0x4000, scoped, tag = 'output window, operand 1']
    #allocation12 [shape = 's32[2]{0}', space=sflag, size = 0x8, scoped, tag = 'scoped memory for tpu_custom_call.1']
    %11 = vsyncpa [#allocation3], 0
    %s12 = scalar_lea.sflag [#allocation3], 1
    %13 = vsyncpa %s12, 0
    %14 = vsyncpa [#allocation6], 0
    %s15 = scalar_lea.sflag [#allocation6], 1
    %16 = vsyncpa %s15, 0
    %17 = vsyncpa [#allocation9], 0
    %s18 = scalar_lea.sflag [#allocation9], 1
    %19 = vsyncpa %s18, 0
    %20 = vsyncpa [#allocation4], 0
    %s21 = scalar_lea.sflag [#allocation4], 1
    %22 = vsyncpa %s21, 0
    %23 = vsyncpa [#allocation12], 0
    %s24 = scalar_lea.sflag [#allocation12], 1
    %25 = vsyncpa %s24, 0
    loop: start=0, step=1, limit=4
    $region2: #{tpu_custom_call.1} parent=1 // loop_pre_header
      _
    $region3: #{tpu_custom_call.1} parent=1 // loop_header
      %s27 = sphi 0, %s31
      %p28 = scmp.ge.s32.totalorder %s27, 4
      %s34 = sphi 0, %s46
      %s35 = sphi 0, %s42
      %s36 = sphi 0, %s34
      %s37 = sphi 0, %s35
      %s38 = sphi 0, %s36
      %s39 = sphi 0, %s37
      %s51 = sphi 0, %s53
      %s54 = sphi 0, %s51
      %s55 = sphi 0, %s54
      %s71 = sphi 0, %s55
      %s77 = sphi 0, %s79
      %s80 = sphi 0, %s77
      %s81 = sphi 0, %s80
      %s97 = sphi 0, %s81
      %s103 = sphi 0, %s105
      %s106 = sphi 0, %s103
      %s107 = sphi 0, %s106
      %s123 = sphi 0, %s107
      %s131 = sphi 0, %s133
      %s134 = sphi 0, %s131
      %s135 = sphi 0, %s134
      %s151 = sphi 0, %s135
      %s159 = sphi 0, %s161
      %s162 = sphi 0, %s159
      %s163 = sphi 0, %s162
      %s179 = sphi 0, %s163
      %s187 = sphi 0, %s189
      %s190 = sphi 0, %s187
      %s191 = sphi 0, %s190
      %s207 = sphi 0, %s191
    $region4: #{tpu_custom_call.1} parent=1 // loop_header_branch
      %30 = sbr.rel (%p28) target = $region8
    $region5: #{tpu_custom_call.1} parent=1 // loop_body
      %s32 = ssub.s32 %s27, 1
      %s33 = ssub.s32 %s27, 2
      %s40 = sadd.s32 1, %s35
      %p41 = scmp.ge.s32.totalorder %s40, 1
      %s42 = scalar_select %p41, 0, %s40
      %s43 = sadd.s32 1, %s34
      %s44 = scalar_select %p41, %s43, %s34
      %p45 = scmp.ge.s32.totalorder %s44, 2
      %s46 = scalar_select %p45, 0, %s44
      %s47 = ssub.s32 %s34, %s46
      %s48 = ssub.s32 %s35, %s42
      %s49 = sor.u32 %s47, %s48
      %p50 = scmp.eq.s32.totalorder %s49, 0
      %s52 = sadd.s32 %s51, 1
      %s53 = scalar_select %p50, %s51, %s52
      %p56 = pneg %p50
      %p57 = scmp.eq.s32.totalorder %s27, 1
      %p58 = por %p56, %p57
      %p59 = scmp.ne.s32.totalorder %s51, %s54
      %p60 = scmp.eq.s32.totalorder %s27, 0
      %p61 = por %p59, %p60
      %p62 = scmp.ne.s32.totalorder %s51, %s54
      %p63 = scmp.eq.s32.totalorder %s32, 1
      %p64 = por %p62, %p63
      %p65 = scmp.ne.s32.totalorder %s54, %s55
      %p66 = scmp.eq.s32.totalorder %s32, 0
      %p67 = por %p65, %p66
      %p68 = scmp.ne.s32.totalorder %s54, %s55
      %p69 = scmp.eq.s32.totalorder %s33, 1
      %p70 = por %p68, %p69
      %p72 = scmp.ne.s32.totalorder %s55, %s71
      %p73 = scmp.eq.s32.totalorder %s33, 0
      %p74 = por %p72, %p73
      %s75 = ssub.s32 %s34, %s46
      %p76 = scmp.eq.s32.totalorder %s75, 0
      %s78 = sadd.s32 %s77, 1
      %s79 = scalar_select %p76, %s77, %s78
      %p82 = pneg %p76
      %p83 = scmp.eq.s32.totalorder %s27, 1
      %p84 = por %p82, %p83
      %p85 = scmp.ne.s32.totalorder %s77, %s80
      %p86 = scmp.eq.s32.totalorder %s27, 0
      %p87 = por %p85, %p86
      %p88 = scmp.ne.s32.totalorder %s77, %s80
      %p89 = scmp.eq.s32.totalorder %s32, 1
      %p90 = por %p88, %p89
      %p91 = scmp.ne.s32.totalorder %s80, %s81
      %p92 = scmp.eq.s32.totalorder %s32, 0
      %p93 = por %p91, %p92
      %p94 = scmp.ne.s32.totalorder %s80, %s81
      %p95 = scmp.eq.s32.totalorder %s33, 1
      %p96 = por %p94, %p95
      %p98 = scmp.ne.s32.totalorder %s81, %s97
      %p99 = scmp.eq.s32.totalorder %s33, 0
      %p100 = por %p98, %p99
      %s101 = ssub.s32 %s34, %s46
      %p102 = scmp.eq.s32.totalorder %s101, 0
      %s104 = sadd.s32 %s103, 1
      %s105 = scalar_select %p102, %s103, %s104
      %p108 = pneg %p102
      %p109 = scmp.eq.s32.totalorder %s27, 1
      %p110 = por %p108, %p109
      %p111 = scmp.ne.s32.totalorder %s103, %s106
      %p112 = scmp.eq.s32.totalorder %s27, 0
      %p113 = por %p111, %p112
      %p114 = scmp.ne.s32.totalorder %s103, %s106
      %p115 = scmp.eq.s32.totalorder %s32, 1
      %p116 = por %p114, %p115
      %p117 = scmp.ne.s32.totalorder %s106, %s107
      %p118 = scmp.eq.s32.totalorder %s32, 0
      %p119 = por %p117, %p118
      %p120 = scmp.ne.s32.totalorder %s106, %s107
      %p121 = scmp.eq.s32.totalorder %s33, 1
      %p122 = por %p120, %p121
      %p124 = scmp.ne.s32.totalorder %s107, %s123
      %p125 = scmp.eq.s32.totalorder %s33, 0
      %p126 = por %p124, %p125
      %s127 = ssub.s32 %s34, %s46
      %s128 = ssub.s32 %s35, %s42
      %s129 = sor.u32 %s127, %s128
      %p130 = scmp.eq.s32.totalorder %s129, 0
      %s132 = sadd.s32 %s131, 1
      %s133 = scalar_select %p130, %s131, %s132
      %p136 = pneg %p130
      %p137 = scmp.eq.s32.totalorder %s27, 1
      %p138 = por %p136, %p137
      %p139 = scmp.ne.s32.totalorder %s131, %s134
      %p140 = scmp.eq.s32.totalorder %s27, 0
      %p141 = por %p139, %p140
      %p142 = scmp.ne.s32.totalorder %s131, %s134
      %p143 = scmp.eq.s32.totalorder %s32, 1
      %p144 = por %p142, %p143
      %p145 = scmp.ne.s32.totalorder %s134, %s135
      %p146 = scmp.eq.s32.totalorder %s32, 0
      %p147 = por %p145, %p146
      %p148 = scmp.ne.s32.totalorder %s134, %s135
      %p149 = scmp.eq.s32.totalorder %s33, 1
      %p150 = por %p148, %p149
      %p152 = scmp.ne.s32.totalorder %s135, %s151
      %p153 = scmp.eq.s32.totalorder %s33, 0
      %p154 = por %p152, %p153
      %s155 = ssub.s32 %s34, %s46
      %s156 = ssub.s32 %s35, %s42
      %s157 = sor.u32 %s155, %s156
      %p158 = scmp.eq.s32.totalorder %s157, 0
      %s160 = sadd.s32 %s159, 1
      %s161 = scalar_select %p158, %s159, %s160
      %p164 = pneg %p158
      %p165 = scmp.eq.s32.totalorder %s27, 1
      %p166 = por %p164, %p165
      %p167 = scmp.ne.s32.totalorder %s159, %s162
      %p168 = scmp.eq.s32.totalorder %s27, 0
      %p169 = por %p167, %p168
      %p170 = scmp.ne.s32.totalorder %s159, %s162
      %p171 = scmp.eq.s32.totalorder %s32, 1
      %p172 = por %p170, %p171
      %p173 = scmp.ne.s32.totalorder %s162, %s163
      %p174 = scmp.eq.s32.totalorder %s32, 0
      %p175 = por %p173, %p174
      %p176 = scmp.ne.s32.totalorder %s162, %s163
      %p177 = scmp.eq.s32.totalorder %s33, 1
      %p178 = por %p176, %p177
      %p180 = scmp.ne.s32.totalorder %s163, %s179
      %p181 = scmp.eq.s32.totalorder %s33, 0
      %p182 = por %p180, %p181
      %s183 = ssub.s32 %s34, %s46
      %s184 = ssub.s32 %s35, %s42
      %s185 = sor.u32 %s183, %s184
      %p186 = scmp.eq.s32.totalorder %s185, 0
      %s188 = sadd.s32 %s187, 1
      %s189 = scalar_select %p186, %s187, %s188
      %p192 = pneg %p186
      %p193 = scmp.eq.s32.totalorder %s27, 1
      %p194 = por %p192, %p193
      %p195 = scmp.ne.s32.totalorder %s187, %s190
      %p196 = scmp.eq.s32.totalorder %s27, 0
      %p197 = por %p195, %p196
      %p198 = scmp.ne.s32.totalorder %s187, %s190
      %p199 = scmp.eq.s32.totalorder %s32, 1
      %p200 = por %p198, %p199
      %p201 = scmp.ne.s32.totalorder %s190, %s191
      %p202 = scmp.eq.s32.totalorder %s32, 0
      %p203 = por %p201, %p202
      %p204 = scmp.ne.s32.totalorder %s190, %s191
      %p205 = scmp.eq.s32.totalorder %s33, 1
      %p206 = por %p204, %p205
      %p208 = scmp.ne.s32.totalorder %s191, %s207
      %p209 = scmp.eq.s32.totalorder %s33, 0
      %p210 = por %p208, %p209
      %p211 = scmp.le.s32.totalorder 1, %s27
      %p212 = scmp.lt.s32.totalorder %s27, 3
      %p213 = pnand %p211, %p212
      %p214 = pneg %p213
      // Predicated region
      $region9: #{tpu_custom_call.1} parent=5 // pred_check
        _
      $region10: #{tpu_custom_call.1} parent=5 // pred_check_branch
        %216 = sbr.rel (%p213) target = $region12
      $region11: #{tpu_custom_call.1} parent=5 // pred_region
        %s217 = ssub.s32 %s27, 1
      $region12: #{tpu_custom_call.1} parent=5 // pred_fallthru
        _
      %p218 = scmp.lt.s32.totalorder %s27, 2
      // Predicated region
      $region13: #{tpu_custom_call.1} parent=5 // pred_check
        %p219 = pneg %p218
      $region14: #{tpu_custom_call.1} parent=5 // pred_check_branch
        %221 = sbr.rel (%p219) target = $region16
      $region15: #{tpu_custom_call.1} parent=5 // pred_region
        // Predicated region
        $region17: #{tpu_custom_call.1} parent=15 // pred_check
          %p222 = pneg %p61
        $region18: #{tpu_custom_call.1} parent=15 // pred_check_branch
          %224 = sbr.rel (%p222) target = $region20
        $region19: #{tpu_custom_call.1} parent=15 // pred_region
          %s225 = sand.u32 %s51, 1
          %s226 = scalar_lea.sflag [#allocation3], %s225
          %s227 = sand.u32 %s51, 1
          %s228 = smul.addr %s227, 16
          %s229 = scalar_lea.vmem [#allocation2], %s228
          %s230 = smul.u32 2, %s34
          %s232 = ssub.s32 256, 256
          %233 = vsyncadd %s226, %s232
          %s234 = sadd.s32 %s35, %s230
          %s235 = smul.addr %s234, 128
          %s236 = scalar_lea.hbm %s0, %s235
          %s237 = sshll.u32 %s229, 4
          %s238 = int_to_ptr.vmem [resolvable:$true] %s237
          %243 = dma.hbm_to_vmem [thread:$0]  %s236, 256, %s238, %s226, 128, 128, 8
        $region20: #{tpu_custom_call.1} parent=15 // pred_fallthru
          _
        // Predicated region
        $region21: #{tpu_custom_call.1} parent=15 // pred_check
          %p244 = pneg %p87
        $region22: #{tpu_custom_call.1} parent=15 // pred_check_branch
          %246 = sbr.rel (%p244) target = $region24
        $region23: #{tpu_custom_call.1} parent=15 // pred_region
          %s247 = sand.u32 %s27, 1
          %s248 = scalar_lea.sflag [#allocation6], %s247
          %s249 = sand.u32 %s77, 1
          %s250 = smul.addr %s249, 16
          %s251 = scalar_lea.vmem [#allocation5], %s250
          %s252 = smul.u32 2, %s34
          %s254 = ssub.s32 256, 256
          %255 = vsyncadd %s248, %s254
          %s256 = smul.addr %s252, 128
          %s257 = scalar_lea.hbm %s1, %s256
          %s258 = sshll.u32 %s251, 4
          %s259 = int_to_ptr.vmem [resolvable:$true] %s258
          %264 = dma.hbm_to_vmem [thread:$0]  %s257, 256, %s259, %s248, 128, 128, 8
        $region24: #{tpu_custom_call.1} parent=15 // pred_fallthru
          _
        // Predicated region
        $region25: #{tpu_custom_call.1} parent=15 // pred_check
          %p265 = pneg %p113
        $region26: #{tpu_custom_call.1} parent=15 // pred_check_branch
          %267 = sbr.rel (%p265) target = $region28
        $region27: #{tpu_custom_call.1} parent=15 // pred_region
          %s268 = sand.u32 %s27, 1
          %s269 = scalar_lea.sflag [#allocation6], %s268
          %s270 = sand.u32 %s103, 1
          %s271 = smul.addr %s270, 16
          %s272 = scalar_lea.vmem [#allocation7], %s271
          %s273 = smul.u32 2, %s34
          %s275 = ssub.s32 256, 256
          %276 = vsyncadd %s269, %s275
          %s277 = smul.addr %s273, 128
          %s278 = scalar_lea.hbm %s2, %s277
          %s279 = sshll.u32 %s272, 4
          %s280 = int_to_ptr.vmem [resolvable:$true] %s279
          %285 = dma.hbm_to_vmem [thread:$0]  %s278, 256, %s280, %s269, 128, 128, 8
        $region28: #{tpu_custom_call.1} parent=15 // pred_fallthru
          _
        // Predicated region
        $region29: #{tpu_custom_call.1} parent=15 // pred_check
          %p286 = pneg %p141
        $region30: #{tpu_custom_call.1} parent=15 // pred_check_branch
          %288 = sbr.rel (%p286) target = $region32
        $region31: #{tpu_custom_call.1} parent=15 // pred_region
          %s289 = sand.u32 %s131, 1
          %s290 = scalar_lea.sflag [#allocation9], %s289
          %s291 = sand.u32 %s131, 1
          %s292 = smul.addr %s291, 16
          %s293 = scalar_lea.vmem [#allocation8], %s292
          %s294 = smul.u32 2, %s34
          %s296 = ssub.s32 256, 256
          %297 = vsyncadd %s290, %s296
          %s298 = sadd.s32 %s35, %s294
          %s299 = smul.addr %s298, 128
          %s300 = scalar_lea.hbm %s3, %s299
          %s301 = sshll.u32 %s293, 4
          %s302 = int_to_ptr.vmem [resolvable:$true] %s301
          %307 = dma.hbm_to_vmem [thread:$0]  %s300, 256, %s302, %s290, 128, 128, 8
        $region32: #{tpu_custom_call.1} parent=15 // pred_fallthru
          _
      $region16: #{tpu_custom_call.1} parent=5 // pred_fallthru
        _
      %p308 = scmp.le.s32.totalorder 1, %s27
      %p309 = scmp.lt.s32.totalorder %s27, 3
      %p310 = pnand %p308, %p309
      %p311 = pneg %p310
      // Predicated region
      $region33: #{tpu_custom_call.1} parent=5 // pred_check
        _
      $region34: #{tpu_custom_call.1} parent=5 // pred_check_branch
        %313 = sbr.rel (%p310) target = $region36
      $region35: #{tpu_custom_call.1} parent=5 // pred_region
        %s314 = ssub.s32 %s27, 1
        %s315 = sand.u32 %s54, 1
        %s316 = scalar_lea.sflag [#allocation3], %s315
        %s317 = sand.u32 %s54, 1
        %s318 = smul.addr %s317, 16
        %s319 = scalar_lea.vmem [#allocation2], %s318
        // Predicated region
        $region37: #{tpu_custom_call.1} parent=35 // pred_check
          %p320 = pneg %p67
        $region38: #{tpu_custom_call.1} parent=35 // pred_check_branch
          %322 = sbr.rel (%p320) target = $region40
        $region39: #{tpu_custom_call.1} parent=35 // pred_region
          %323 = dma.done %s316, 256
        $region40: #{tpu_custom_call.1} parent=35 // pred_fallthru
          _
        %s324 = sand.u32 %s32, 1
        %s325 = scalar_lea.sflag [#allocation6], %s324
        %s326 = sand.u32 %s80, 1
        %s327 = smul.addr %s326, 16
        %s328 = scalar_lea.vmem [#allocation5], %s327
        // Predicated region
        $region41: #{tpu_custom_call.1} parent=35 // pred_check
          %p329 = pneg %p93
        $region42: #{tpu_custom_call.1} parent=35 // pred_check_branch
          %331 = sbr.rel (%p329) target = $region44
        $region43: #{tpu_custom_call.1} parent=35 // pred_region
          %332 = dma.done %s325, 256
        $region44: #{tpu_custom_call.1} parent=35 // pred_fallthru
          _
        %s333 = sand.u32 %s32, 1
        %s334 = scalar_lea.sflag [#allocation6], %s333
        %s335 = sand.u32 %s106, 1
        %s336 = smul.addr %s335, 16
        %s337 = scalar_lea.vmem [#allocation7], %s336
        // Predicated region
        $region45: #{tpu_custom_call.1} parent=35 // pred_check
          %p338 = pneg %p119
        $region46: #{tpu_custom_call.1} parent=35 // pred_check_branch
          %340 = sbr.rel (%p338) target = $region48
        $region47: #{tpu_custom_call.1} parent=35 // pred_region
          %341 = dma.done %s334, 256
        $region48: #{tpu_custom_call.1} parent=35 // pred_fallthru
          _
        %s342 = sand.u32 %s134, 1
        %s343 = scalar_lea.sflag [#allocation9], %s342
        %s344 = sand.u32 %s134, 1
        %s345 = smul.addr %s344, 16
        %s346 = scalar_lea.vmem [#allocation8], %s345
        // Predicated region
        $region49: #{tpu_custom_call.1} parent=35 // pred_check
          %p347 = pneg %p147
        $region50: #{tpu_custom_call.1} parent=35 // pred_check_branch
          %349 = sbr.rel (%p347) target = $region52
        $region51: #{tpu_custom_call.1} parent=35 // pred_region
          %350 = dma.done %s343, 256
        $region52: #{tpu_custom_call.1} parent=35 // pred_fallthru
          _
        %s351 = sand.u32 %s54, 1
        %s352 = scalar_lea.sflag [#allocation3], %s351
        %s353 = sand.u32 %s54, 1
        %s354 = smul.addr %s353, 16
        %s355 = scalar_lea.vmem [#allocation2], %s354
        %p356 = pneg %p67
        %p357 = pneg %p64
        %s358 = sand.u32 %s32, 1
        %s359 = scalar_lea.sflag [#allocation6], %s358
        %s360 = sand.u32 %s80, 1
        %s361 = smul.addr %s360, 16
        %s362 = scalar_lea.vmem [#allocation5], %s361
        %p363 = pneg %p93
        %p364 = pneg %p90
        %s365 = sand.u32 %s32, 1
        %s366 = scalar_lea.sflag [#allocation6], %s365
        %s367 = sand.u32 %s106, 1
        %s368 = smul.addr %s367, 16
        %s369 = scalar_lea.vmem [#allocation7], %s368
        %p370 = pneg %p119
        %p371 = pneg %p116
        %s372 = sand.u32 %s134, 1
        %s373 = scalar_lea.sflag [#allocation9], %s372
        %s374 = sand.u32 %s134, 1
        %s375 = smul.addr %s374, 16
        %s376 = scalar_lea.vmem [#allocation8], %s375
        %p377 = pneg %p147
        %p378 = pneg %p144
        %p379 = pneg %p175
        %p380 = pneg %p172
        %s381 = sand.u32 %s162, 1
        %s382 = scalar_lea.sflag [#allocation4], %s381
        %s383 = sand.u32 %s162, 1
        %s384 = smul.addr %s383, 16
        %s385 = scalar_lea.vmem [#allocation10], %s384
        %p386 = pneg %p203
        %p387 = pneg %p200
        %s388 = sand.u32 %s190, 1
        %s389 = scalar_lea.sflag [#allocation12], %s388
        %s390 = sand.u32 %s190, 1
        %s391 = smul.addr %s390, 16
        %s392 = scalar_lea.vmem [#allocation11], %s391
        %s393 = smul.u32 2, %s36
        %s394 = smul.u32 2, %s36
        %s395 = smul.u32 2, %s36
        %s396 = smul.u32 2, %s36
        %s397 = smul.u32 2, %s36
        %s398 = smul.u32 2, %s36
        %v399 = vld [vmem:[%s319] sm:$0xff]
        %v400 = vld [vmem:[%s319 + $0x8] sm:$0xff]
        %v401 = vmul.f32 %v399, 0.17677669
        %v402 = vmul.f32 %v400, 0.17677669
        %v403 = vld [vmem:[%s328] sm:$0xff]
        %v404 = vld [vmem:[%s328 + $0x8] sm:$0xff]
        %v407 = vcombine.high %v401, %v401
        %v409 = vunpack.c.l.s4 1966171168
        %v410 = vunpack.c.0.s8 %v409
        %v411 = vlaneseq
        %v412 = vshrl.u32 %v411, 7
        %v413 = vsub.s32 %v410, %v412
        %v414 = vrot.slane %v401, %v413
        %v416 = vunpack.c.l.s4 1966171168
        %v417 = vunpack.c.0.s8 %v416
        %v418 = vlaneseq
        %v419 = vshrl.u32 %v418, 7
        %v420 = vsub.s32 %v417, %v419
        %v421 = vrot.slane %v407, %v420
        %v422 = vcombine.high %v414, %v414
        %v423 = vcombine.high %v421, %v421
        %v425 = vunpack.c.l.s4 1966171168
        %v426 = vunpack.c.0.s8 %v425
        %v427 = vlaneseq
        %v428 = vshrl.u32 %v427, 7
        %v429 = vsub.s32 %v426, %v428
        %v430 = vrot.slane %v414, %v429
        %v432 = vunpack.c.l.s4 1966171168
        %v433 = vunpack.c.0.s8 %v432
        %v434 = vlaneseq
        %v435 = vshrl.u32 %v434, 7
        %v436 = vsub.s32 %v433, %v435
        %v437 = vrot.slane %v421, %v436
        %v439 = vunpack.c.l.s4 1966171168
        %v440 = vunpack.c.0.s8 %v439
        %v441 = vlaneseq
        %v442 = vshrl.u32 %v441, 7
        %v443 = vsub.s32 %v440, %v442
        %v444 = vrot.slane %v422, %v443
        %v446 = vunpack.c.l.s4 1966171168
        %v447 = vunpack.c.0.s8 %v446
        %v448 = vlaneseq
        %v449 = vshrl.u32 %v448, 7
        %v450 = vsub.s32 %v447, %v449
        %v451 = vrot.slane %v423, %v450
        %v452 = vcombine.high %v430, %v430
        %v453 = vcombine.high %v437, %v437
        %v454 = vcombine.high %v444, %v444
        %v455 = vcombine.high %v451, %v451
        %v456 = vcombine.high %v402, %v402
        %v458 = vunpack.c.l.s4 1966171168
        %v459 = vunpack.c.0.s8 %v458
        %v460 = vlaneseq
        %v461 = vshrl.u32 %v460, 7
        %v462 = vsub.s32 %v459, %v461
        %v463 = vrot.slane %v402, %v462
        %v465 = vunpack.c.l.s4 1966171168
        %v466 = vunpack.c.0.s8 %v465
        %v467 = vlaneseq
        %v468 = vshrl.u32 %v467, 7
        %v469 = vsub.s32 %v466, %v468
        %v470 = vrot.slane %v456, %v469
        %v471 = vcombine.high %v463, %v463
        %v472 = vcombine.high %v470, %v470
        %v474 = vunpack.c.l.s4 1966171168
        %v475 = vunpack.c.0.s8 %v474
        %v476 = vlaneseq
        %v477 = vshrl.u32 %v476, 7
        %v478 = vsub.s32 %v475, %v477
        %v479 = vrot.slane %v463, %v478
        %v481 = vunpack.c.l.s4 1966171168
        %v482 = vunpack.c.0.s8 %v481
        %v483 = vlaneseq
        %v484 = vshrl.u32 %v483, 7
        %v485 = vsub.s32 %v482, %v484
        %v486 = vrot.slane %v470, %v485
        %v488 = vunpack.c.l.s4 1966171168
        %v489 = vunpack.c.0.s8 %v488
        %v490 = vlaneseq
        %v491 = vshrl.u32 %v490, 7
        %v492 = vsub.s32 %v489, %v491
        %v493 = vrot.slane %v471, %v492
        %v495 = vunpack.c.l.s4 1966171168
        %v496 = vunpack.c.0.s8 %v495
        %v497 = vlaneseq
        %v498 = vshrl.u32 %v497, 7
        %v499 = vsub.s32 %v496, %v498
        %v500 = vrot.slane %v472, %v499
        %v501 = vcombine.high %v479, %v479
        %v502 = vcombine.high %v486, %v486
        %v503 = vcombine.high %v493, %v493
        %v504 = vcombine.high %v500, %v500
        %v505 = vlaneseq
        %v506 = vshrl.u32 %v505, 7
        %v507 = vsub.s32 0, %v506
        %v508 = vrot.slane %v430, %v507
        %v509 = vlaneseq
        %v510 = vshrl.u32 %v509, 7
        %v511 = vsub.s32 0, %v510
        %v512 = vrot.slane %v444, %v511
        %v513 = vlaneseq
        %v514 = vshrl.u32 %v513, 7
        %v515 = vsub.s32 0, %v514
        %v516 = vrot.slane %v452, %v515
        %v517 = vlaneseq
        %v518 = vshrl.u32 %v517, 7
        %v519 = vsub.s32 0, %v518
        %v520 = vrot.slane %v454, %v519
        %v521 = vlaneseq
        %v522 = vshrl.u32 %v521, 7
        %v523 = vsub.s32 0, %v522
        %v524 = vrot.slane %v437, %v523
        %v525 = vlaneseq
        %v526 = vshrl.u32 %v525, 7
        %v527 = vsub.s32 0, %v526
        %v528 = vrot.slane %v451, %v527
        %v529 = vlaneseq
        %v530 = vshrl.u32 %v529, 7
        %v531 = vsub.s32 0, %v530
        %v532 = vrot.slane %v453, %v531
        %v533 = vlaneseq
        %v534 = vshrl.u32 %v533, 7
        %v535 = vsub.s32 0, %v534
        %v536 = vrot.slane %v455, %v535
        %v537 = vlaneseq
        %v538 = vshrl.u32 %v537, 7
        %v539 = vsub.s32 0, %v538
        %v540 = vrot.slane %v479, %v539
        %v541 = vlaneseq
        %v542 = vshrl.u32 %v541, 7
        %v543 = vsub.s32 0, %v542
        %v544 = vrot.slane %v493, %v543
        %v545 = vlaneseq
        %v546 = vshrl.u32 %v545, 7
        %v547 = vsub.s32 0, %v546
        %v548 = vrot.slane %v501, %v547
        %v549 = vlaneseq
        %v550 = vshrl.u32 %v549, 7
        %v551 = vsub.s32 0, %v550
        %v552 = vrot.slane %v503, %v551
        %v553 = vlaneseq
        %v554 = vshrl.u32 %v553, 7
        %v555 = vsub.s32 0, %v554
        %v556 = vrot.slane %v486, %v555
        %v557 = vlaneseq
        %v558 = vshrl.u32 %v557, 7
        %v559 = vsub.s32 0, %v558
        %v560 = vrot.slane %v500, %v559
        %v561 = vlaneseq
        %v562 = vshrl.u32 %v561, 7
        %v563 = vsub.s32 0, %v562
        %v564 = vrot.slane %v502, %v563
        %v565 = vlaneseq
        %v566 = vshrl.u32 %v565, 7
        %v567 = vsub.s32 0, %v566
        %v568 = vrot.slane %v504, %v567
        %v585 = vmul.f32 %v508, %v403
        %v586 = vmul.f32 %v512, %v403
        %v587 = vmul.f32 %v516, %v403
        %v588 = vmul.f32 %v520, %v403
        %v589 = vmul.f32 %v524, %v403
        %v590 = vmul.f32 %v528, %v403
        %v591 = vmul.f32 %v532, %v403
        %v592 = vmul.f32 %v536, %v403
        %v593 = vmul.f32 %v540, %v404
        %v594 = vmul.f32 %v544, %v404
        %v595 = vmul.f32 %v548, %v404
        %v596 = vmul.f32 %v552, %v404
        %v597 = vmul.f32 %v556, %v404
        %v598 = vmul.f32 %v560, %v404
        %v599 = vmul.f32 %v564, %v404
        %v600 = vmul.f32 %v568, %v404
        %vm601 = vcmask 261120
        %v602 = vsel %vm601, %v585, 0.0
        %603 = vadd.xlane.f32.xlu0 %v602
        %v604 = vpop.xlane.xlu0 %603
        %v605 = vsel %vm601, %v586, 0.0
        %606 = vadd.xlane.f32.xlu0 %v605
        %v607 = vpop.xlane.xlu0 %606
        %v608 = vsel %vm601, %v587, 0.0
        %609 = vadd.xlane.f32.xlu0 %v608
        %v610 = vpop.xlane.xlu0 %609
        %v611 = vsel %vm601, %v588, 0.0
        %612 = vadd.xlane.f32.xlu0 %v611
        %v613 = vpop.xlane.xlu0 %612
        %v614 = vsel %vm601, %v589, 0.0
        %615 = vadd.xlane.f32.xlu0 %v614
        %v616 = vpop.xlane.xlu0 %615
        %v617 = vsel %vm601, %v590, 0.0
        %618 = vadd.xlane.f32.xlu0 %v617
        %v619 = vpop.xlane.xlu0 %618
        %v620 = vsel %vm601, %v591, 0.0
        %621 = vadd.xlane.f32.xlu0 %v620
        %v622 = vpop.xlane.xlu0 %621
        %v623 = vsel %vm601, %v592, 0.0
        %624 = vadd.xlane.f32.xlu0 %v623
        %v625 = vpop.xlane.xlu0 %624
        %v626 = vsel %vm601, %v593, 0.0
        %627 = vadd.xlane.f32.xlu0 %v626
        %v628 = vpop.xlane.xlu0 %627
        %v629 = vsel %vm601, %v594, 0.0
        %630 = vadd.xlane.f32.xlu0 %v629
        %v631 = vpop.xlane.xlu0 %630
        %v632 = vsel %vm601, %v595, 0.0
        %633 = vadd.xlane.f32.xlu0 %v632
        %v634 = vpop.xlane.xlu0 %633
        %v635 = vsel %vm601, %v596, 0.0
        %636 = vadd.xlane.f32.xlu0 %v635
        %v637 = vpop.xlane.xlu0 %636
        %v638 = vsel %vm601, %v597, 0.0
        %639 = vadd.xlane.f32.xlu0 %v638
        %v640 = vpop.xlane.xlu0 %639
        %v641 = vsel %vm601, %v598, 0.0
        %642 = vadd.xlane.f32.xlu0 %v641
        %v643 = vpop.xlane.xlu0 %642
        %v644 = vsel %vm601, %v599, 0.0
        %645 = vadd.xlane.f32.xlu0 %v644
        %v646 = vpop.xlane.xlu0 %645
        %v647 = vsel %vm601, %v600, 0.0
        %648 = vadd.xlane.f32.xlu0 %v647
        %v649 = vpop.xlane.xlu0 %648
        %v650 = vmul.f32 %v604, 1.442695
        %v651 = vpow.pop %v650
        %v652 = vmul.f32 %v607, 1.442695
        %v653 = vpow.pop %v652
        %v654 = vmul.f32 %v610, 1.442695
        %v655 = vpow.pop %v654
        %v656 = vmul.f32 %v613, 1.442695
        %v657 = vpow.pop %v656
        %v658 = vmul.f32 %v616, 1.442695
        %v659 = vpow.pop %v658
        %v660 = vmul.f32 %v619, 1.442695
        %v661 = vpow.pop %v660
        %v662 = vmul.f32 %v622, 1.442695
        %v663 = vpow.pop %v662
        %v664 = vmul.f32 %v625, 1.442695
        %v665 = vpow.pop %v664
        %v666 = vmul.f32 %v628, 1.442695
        %v667 = vpow.pop %v666
        %v668 = vmul.f32 %v631, 1.442695
        %v669 = vpow.pop %v668
        %v670 = vmul.f32 %v634, 1.442695
        %v671 = vpow.pop %v670
        %v672 = vmul.f32 %v637, 1.442695
        %v673 = vpow.pop %v672
        %v674 = vmul.f32 %v640, 1.442695
        %v675 = vpow.pop %v674
        %v676 = vmul.f32 %v643, 1.442695
        %v677 = vpow.pop %v676
        %v678 = vmul.f32 %v646, 1.442695
        %v679 = vpow.pop %v678
        %v680 = vmul.f32 %v649, 1.442695
        %v681 = vpow.pop %v680
        %v682 = vld [vmem:[%s346] sm:$0xff]
        %v683 = vld [vmem:[%s346 + $0x8] sm:$0xff]
        %v686 = vlaneseq
        %v687 = vshrl.u32 %v686, 7
        %v688 = vsub.s32 0, %v687
        %v689 = vrot.slane %v682, %v688
        %691 = vbcast.lane.b32.xlu0 %v689, 256
        %v692 = vpop.permute.xlu0 %691
        %v693 = vlaneseq
        %v694 = vshrl.u32 %v693, 7
        %v695 = vsub.s32 1, %v694
        %v696 = vrot.slane %v682, %v695
        %698 = vbcast.lane.b32.xlu0 %v696, 256
        %v699 = vpop.permute.xlu0 %698
        %v700 = vlaneseq
        %v701 = vshrl.u32 %v700, 7
        %v702 = vsub.s32 2, %v701
        %v703 = vrot.slane %v682, %v702
        %705 = vbcast.lane.b32.xlu0 %v703, 256
        %v706 = vpop.permute.xlu0 %705
        %v707 = vlaneseq
        %v708 = vshrl.u32 %v707, 7
        %v709 = vsub.s32 3, %v708
        %v710 = vrot.slane %v682, %v709
        %712 = vbcast.lane.b32.xlu0 %v710, 256
        %v713 = vpop.permute.xlu0 %712
        %v714 = vlaneseq
        %v715 = vshrl.u32 %v714, 7
        %v716 = vsub.s32 4, %v715
        %v717 = vrot.slane %v682, %v716
        %719 = vbcast.lane.b32.xlu0 %v717, 256
        %v720 = vpop.permute.xlu0 %719
        %v721 = vlaneseq
        %v722 = vshrl.u32 %v721, 7
        %v723 = vsub.s32 5, %v722
        %v724 = vrot.slane %v682, %v723
        %726 = vbcast.lane.b32.xlu0 %v724, 256
        %v727 = vpop.permute.xlu0 %726
        %v728 = vlaneseq
        %v729 = vshrl.u32 %v728, 7
        %v730 = vsub.s32 6, %v729
        %v731 = vrot.slane %v682, %v730
        %733 = vbcast.lane.b32.xlu0 %v731, 256
        %v734 = vpop.permute.xlu0 %733
        %v735 = vlaneseq
        %v736 = vshrl.u32 %v735, 7
        %v737 = vsub.s32 7, %v736
        %v738 = vrot.slane %v682, %v737
        %740 = vbcast.lane.b32.xlu0 %v738, 256
        %v741 = vpop.permute.xlu0 %740
        %v742 = vlaneseq
        %v743 = vshrl.u32 %v742, 7
        %v744 = vsub.s32 0, %v743
        %v745 = vrot.slane %v683, %v744
        %747 = vbcast.lane.b32.xlu0 %v745, 256
        %v748 = vpop.permute.xlu0 %747
        %v749 = vlaneseq
        %v750 = vshrl.u32 %v749, 7
        %v751 = vsub.s32 1, %v750
        %v752 = vrot.slane %v683, %v751
        %754 = vbcast.lane.b32.xlu0 %v752, 256
        %v755 = vpop.permute.xlu0 %754
        %v756 = vlaneseq
        %v757 = vshrl.u32 %v756, 7
        %v758 = vsub.s32 2, %v757
        %v759 = vrot.slane %v683, %v758
        %761 = vbcast.lane.b32.xlu0 %v759, 256
        %v762 = vpop.permute.xlu0 %761
        %v763 = vlaneseq
        %v764 = vshrl.u32 %v763, 7
        %v765 = vsub.s32 3, %v764
        %v766 = vrot.slane %v683, %v765
        %768 = vbcast.lane.b32.xlu0 %v766, 256
        %v769 = vpop.permute.xlu0 %768
        %v770 = vlaneseq
        %v771 = vshrl.u32 %v770, 7
        %v772 = vsub.s32 4, %v771
        %v773 = vrot.slane %v683, %v772
        %775 = vbcast.lane.b32.xlu0 %v773, 256
        %v776 = vpop.permute.xlu0 %775
        %v777 = vlaneseq
        %v778 = vshrl.u32 %v777, 7
        %v779 = vsub.s32 5, %v778
        %v780 = vrot.slane %v683, %v779
        %782 = vbcast.lane.b32.xlu0 %v780, 256
        %v783 = vpop.permute.xlu0 %782
        %v784 = vlaneseq
        %v785 = vshrl.u32 %v784, 7
        %v786 = vsub.s32 6, %v785
        %v787 = vrot.slane %v683, %v786
        %789 = vbcast.lane.b32.xlu0 %v787, 256
        %v790 = vpop.permute.xlu0 %789
        %v791 = vlaneseq
        %v792 = vshrl.u32 %v791, 7
        %v793 = vsub.s32 7, %v792
        %v794 = vrot.slane %v683, %v793
        %796 = vbcast.lane.b32.xlu0 %v794, 256
        %v797 = vpop.permute.xlu0 %796
        %v814 = vmul.f32 %v651, %v692
        %v815 = vmul.f32 %v653, %v699
        %v816 = vmul.f32 %v655, %v706
        %v817 = vmul.f32 %v657, %v713
        %v818 = vmul.f32 %v659, %v720
        %v819 = vmul.f32 %v661, %v727
        %v820 = vmul.f32 %v663, %v734
        %v821 = vmul.f32 %v665, %v741
        %v822 = vmul.f32 %v667, %v748
        %v823 = vmul.f32 %v669, %v755
        %v824 = vmul.f32 %v671, %v762
        %v825 = vmul.f32 %v673, %v769
        %v826 = vmul.f32 %v675, %v776
        %v827 = vmul.f32 %v677, %v783
        %v828 = vmul.f32 %v679, %v790
        %v829 = vmul.f32 %v681, %v797
        %846 = vset.pattern.permute.xlu0 0
        %847 = vperm.xlu0 %846, %v814
        %v848 = vpop.permute.xlu0 %847
        %849 = vset.pattern.permute.xlu0 0
        %850 = vperm.xlu0 %849, %v815
        %v851 = vpop.permute.xlu0 %850
        %852 = vset.pattern.permute.xlu0 0
        %853 = vperm.xlu0 %852, %v816
        %v854 = vpop.permute.xlu0 %853
        %855 = vset.pattern.permute.xlu0 0
        %856 = vperm.xlu0 %855, %v817
        %v857 = vpop.permute.xlu0 %856
        %858 = vset.pattern.permute.xlu0 0
        %859 = vperm.xlu0 %858, %v818
        %v860 = vpop.permute.xlu0 %859
        %861 = vset.pattern.permute.xlu0 0
        %862 = vperm.xlu0 %861, %v819
        %v863 = vpop.permute.xlu0 %862
        %864 = vset.pattern.permute.xlu0 0
        %865 = vperm.xlu0 %864, %v820
        %v866 = vpop.permute.xlu0 %865
        %867 = vset.pattern.permute.xlu0 0
        %868 = vperm.xlu0 %867, %v821
        %v869 = vpop.permute.xlu0 %868
        %870 = vset.pattern.permute.xlu0 0
        %871 = vperm.xlu0 %870, %v822
        %v872 = vpop.permute.xlu0 %871
        %873 = vset.pattern.permute.xlu0 0
        %874 = vperm.xlu0 %873, %v823
        %v875 = vpop.permute.xlu0 %874
        %876 = vset.pattern.permute.xlu0 0
        %877 = vperm.xlu0 %876, %v824
        %v878 = vpop.permute.xlu0 %877
        %879 = vset.pattern.permute.xlu0 0
        %880 = vperm.xlu0 %879, %v825
        %v881 = vpop.permute.xlu0 %880
        %882 = vset.pattern.permute.xlu0 0
        %883 = vperm.xlu0 %882, %v826
        %v884 = vpop.permute.xlu0 %883
        %885 = vset.pattern.permute.xlu0 0
        %886 = vperm.xlu0 %885, %v827
        %v887 = vpop.permute.xlu0 %886
        %888 = vset.pattern.permute.xlu0 0
        %889 = vperm.xlu0 %888, %v828
        %v890 = vpop.permute.xlu0 %889
        %891 = vset.pattern.permute.xlu0 0
        %892 = vperm.xlu0 %891, %v829
        %v893 = vpop.permute.xlu0 %892
        %v894 = vlaneseq
        %v895 = vand.u32 %v894, 127
        %v896 = vlaneseq
        %v897 = vshrl.u32 %v896, 7
        %v898 = vsub.s32 %v895, %v897
        %v899 = vrot.slane %v848, %v898
        %v900 = vlaneseq
        %v901 = vshrl.u32 %v900, 7
        %v902 = vsub.s32 %v895, %v901
        %v903 = vrot.slane %v851, %v902
        %v904 = vlaneseq
        %v905 = vshrl.u32 %v904, 7
        %v906 = vsub.s32 %v895, %v905
        %v907 = vrot.slane %v854, %v906
        %v908 = vlaneseq
        %v909 = vshrl.u32 %v908, 7
        %v910 = vsub.s32 %v895, %v909
        %v911 = vrot.slane %v857, %v910
        %v912 = vlaneseq
        %v913 = vshrl.u32 %v912, 7
        %v914 = vsub.s32 %v895, %v913
        %v915 = vrot.slane %v860, %v914
        %v916 = vlaneseq
        %v917 = vshrl.u32 %v916, 7
        %v918 = vsub.s32 %v895, %v917
        %v919 = vrot.slane %v863, %v918
        %v920 = vlaneseq
        %v921 = vshrl.u32 %v920, 7
        %v922 = vsub.s32 %v895, %v921
        %v923 = vrot.slane %v866, %v922
        %v924 = vlaneseq
        %v925 = vshrl.u32 %v924, 7
        %v926 = vsub.s32 %v895, %v925
        %v927 = vrot.slane %v869, %v926
        %v928 = vlaneseq
        %v929 = vshrl.u32 %v928, 7
        %v930 = vsub.s32 %v895, %v929
        %v931 = vrot.slane %v872, %v930
        %v932 = vlaneseq
        %v933 = vshrl.u32 %v932, 7
        %v934 = vsub.s32 %v895, %v933
        %v935 = vrot.slane %v875, %v934
        %v936 = vlaneseq
        %v937 = vshrl.u32 %v936, 7
        %v938 = vsub.s32 %v895, %v937
        %v939 = vrot.slane %v878, %v938
        %v940 = vlaneseq
        %v941 = vshrl.u32 %v940, 7
        %v942 = vsub.s32 %v895, %v941
        %v943 = vrot.slane %v881, %v942
        %v944 = vlaneseq
        %v945 = vshrl.u32 %v944, 7
        %v946 = vsub.s32 %v895, %v945
        %v947 = vrot.slane %v884, %v946
        %v948 = vlaneseq
        %v949 = vshrl.u32 %v948, 7
        %v950 = vsub.s32 %v895, %v949
        %v951 = vrot.slane %v887, %v950
        %v952 = vlaneseq
        %v953 = vshrl.u32 %v952, 7
        %v954 = vsub.s32 %v895, %v953
        %v955 = vrot.slane %v890, %v954
        %v956 = vlaneseq
        %v957 = vshrl.u32 %v956, 7
        %v958 = vsub.s32 %v895, %v957
        %v959 = vrot.slane %v893, %v958
        %vm960 = vcmask 1041409
        %v961 = vsel %vm960, %v903, %v899
        %vm962 = vcmask 1042434
        %v963 = vsel %vm962, %v907, %v961
        %vm964 = vcmask 1043459
        %v965 = vsel %vm964, %v911, %v963
        %vm966 = vcmask 1044484
        %v967 = vsel %vm966, %v915, %v965
        %vm968 = vcmask 1045509
        %v969 = vsel %vm968, %v919, %v967
        %vm970 = vcmask 1046534
        %v971 = vsel %vm970, %v923, %v969
        %vm972 = vcmask 1047559
        %v973 = vsel %vm972, %v927, %v971
        %v974 = vsel %vm960, %v935, %v931
        %v975 = vsel %vm962, %v939, %v974
        %v976 = vsel %vm964, %v943, %v975
        %v977 = vsel %vm966, %v947, %v976
        %v978 = vsel %vm968, %v951, %v977
        %v979 = vsel %vm970, %v955, %v978
        %v980 = vsel %vm972, %v959, %v979
        %vm983 = vcmask 64512
        %v984 = vsel %vm983, %v973, 0.0
        %985 = vadd.xlane.f32.xlu0 %v984
        %v986 = vpop.xlane.xlu0 %985
        %v987 = vsel %vm983, %v980, 0.0
        %988 = vadd.xlane.f32.xlu0 %v987
        %v989 = vpop.xlane.xlu0 %988
        %v990 = vadd.f32 %v986, 1e-08
        %v991 = vadd.f32 %v989, 1e-08
        %v992 = vrcp.pop %v990
        %v993 = vrcp.pop %v991
        %v994 = vmul.f32 %v990, %v992
        %v995 = vmul.f32 %v991, %v993
        %v996 = vsub.f32 2.0, %v994
        %v997 = vsub.f32 2.0, %v995
        %v998 = vmul.f32 %v992, %v996
        %v999 = vmul.f32 %v993, %v997
        %v1002 = vlaneseq
        %v1003 = vshrl.u32 %v1002, 7
        %v1004 = vsub.s32 0, %v1003
        %v1005 = vrot.slane %v998, %v1004
        %v1006 = vlaneseq
        %v1007 = vshrl.u32 %v1006, 7
        %v1008 = vsub.s32 1, %v1007
        %v1009 = vrot.slane %v998, %v1008
        %v1010 = vlaneseq
        %v1011 = vshrl.u32 %v1010, 7
        %v1012 = vsub.s32 2, %v1011
        %v1013 = vrot.slane %v998, %v1012
        %v1014 = vlaneseq
        %v1015 = vshrl.u32 %v1014, 7
        %v1016 = vsub.s32 3, %v1015
        %v1017 = vrot.slane %v998, %v1016
        %v1018 = vlaneseq
        %v1019 = vshrl.u32 %v1018, 7
        %v1020 = vsub.s32 4, %v1019
        %v1021 = vrot.slane %v998, %v1020
        %v1022 = vlaneseq
        %v1023 = vshrl.u32 %v1022, 7
        %v1024 = vsub.s32 5, %v1023
        %v1025 = vrot.slane %v998, %v1024
        %v1026 = vlaneseq
        %v1027 = vshrl.u32 %v1026, 7
        %v1028 = vsub.s32 6, %v1027
        %v1029 = vrot.slane %v998, %v1028
        %v1030 = vlaneseq
        %v1031 = vshrl.u32 %v1030, 7
        %v1032 = vsub.s32 7, %v1031
        %v1033 = vrot.slane %v998, %v1032
        %v1034 = vlaneseq
        %v1035 = vshrl.u32 %v1034, 7
        %v1036 = vsub.s32 0, %v1035
        %v1037 = vrot.slane %v999, %v1036
        %v1038 = vlaneseq
        %v1039 = vshrl.u32 %v1038, 7
        %v1040 = vsub.s32 1, %v1039
        %v1041 = vrot.slane %v999, %v1040
        %v1042 = vlaneseq
        %v1043 = vshrl.u32 %v1042, 7
        %v1044 = vsub.s32 2, %v1043
        %v1045 = vrot.slane %v999, %v1044
        %v1046 = vlaneseq
        %v1047 = vshrl.u32 %v1046, 7
        %v1048 = vsub.s32 3, %v1047
        %v1049 = vrot.slane %v999, %v1048
        %v1050 = vlaneseq
        %v1051 = vshrl.u32 %v1050, 7
        %v1052 = vsub.s32 4, %v1051
        %v1053 = vrot.slane %v999, %v1052
        %v1054 = vlaneseq
        %v1055 = vshrl.u32 %v1054, 7
        %v1056 = vsub.s32 5, %v1055
        %v1057 = vrot.slane %v999, %v1056
        %v1058 = vlaneseq
        %v1059 = vshrl.u32 %v1058, 7
        %v1060 = vsub.s32 6, %v1059
        %v1061 = vrot.slane %v999, %v1060
        %v1062 = vlaneseq
        %v1063 = vshrl.u32 %v1062, 7
        %v1064 = vsub.s32 7, %v1063
        %v1065 = vrot.slane %v999, %v1064
        %v1082 = vmul.f32 %v814, %v1005
        %v1083 = vmul.f32 %v815, %v1009
        %v1084 = vmul.f32 %v816, %v1013
        %v1085 = vmul.f32 %v817, %v1017
        %v1086 = vmul.f32 %v818, %v1021
        %v1087 = vmul.f32 %v819, %v1025
        %v1088 = vmul.f32 %v820, %v1029
        %v1089 = vmul.f32 %v821, %v1033
        %v1090 = vmul.f32 %v822, %v1037
        %v1091 = vmul.f32 %v823, %v1041
        %v1092 = vmul.f32 %v824, %v1045
        %v1093 = vmul.f32 %v825, %v1049
        %v1094 = vmul.f32 %v826, %v1053
        %v1095 = vmul.f32 %v827, %v1057
        %v1096 = vmul.f32 %v828, %v1061
        %v1097 = vmul.f32 %v829, %v1065
        %v1098 = vld [vmem:[%s337] sm:$0xff]
        %v1099 = vld [vmem:[%s337 + $0x8] sm:$0xff]
        %1101 = vset.pattern.permute.xlu0 0
        %1102 = vperm.xlu0 %1101, %v1082
        %v1103 = vpop.permute.xlu0 %1102
        %1106 = vset.pattern.permute.xlu0 0
        %1107 = vperm.xlu0 %1106, %v1083
        %v1108 = vpop.permute.xlu0 %1107
        %1111 = vset.pattern.permute.xlu0 0
        %1112 = vperm.xlu0 %1111, %v1084
        %v1113 = vpop.permute.xlu0 %1112
        %1116 = vset.pattern.permute.xlu0 0
        %1117 = vperm.xlu0 %1116, %v1085
        %v1118 = vpop.permute.xlu0 %1117
        %1121 = vset.pattern.permute.xlu0 0
        %1122 = vperm.xlu0 %1121, %v1086
        %v1123 = vpop.permute.xlu0 %1122
        %1126 = vset.pattern.permute.xlu0 0
        %1127 = vperm.xlu0 %1126, %v1087
        %v1128 = vpop.permute.xlu0 %1127
        %1131 = vset.pattern.permute.xlu0 0
        %1132 = vperm.xlu0 %1131, %v1088
        %v1133 = vpop.permute.xlu0 %1132
        %1136 = vset.pattern.permute.xlu0 0
        %1137 = vperm.xlu0 %1136, %v1089
        %v1138 = vpop.permute.xlu0 %1137
        %1141 = vset.pattern.permute.xlu0 0
        %1142 = vperm.xlu0 %1141, %v1090
        %v1143 = vpop.permute.xlu0 %1142
        %1146 = vset.pattern.permute.xlu0 0
        %1147 = vperm.xlu0 %1146, %v1091
        %v1148 = vpop.permute.xlu0 %1147
        %1151 = vset.pattern.permute.xlu0 0
        %1152 = vperm.xlu0 %1151, %v1092
        %v1153 = vpop.permute.xlu0 %1152
        %1156 = vset.pattern.permute.xlu0 0
        %1157 = vperm.xlu0 %1156, %v1093
        %v1158 = vpop.permute.xlu0 %1157
        %1161 = vset.pattern.permute.xlu0 0
        %1162 = vperm.xlu0 %1161, %v1094
        %v1163 = vpop.permute.xlu0 %1162
        %1166 = vset.pattern.permute.xlu0 0
        %1167 = vperm.xlu0 %1166, %v1095
        %v1168 = vpop.permute.xlu0 %1167
        %1171 = vset.pattern.permute.xlu0 0
        %1172 = vperm.xlu0 %1171, %v1096
        %v1173 = vpop.permute.xlu0 %1172
        %1176 = vset.pattern.permute.xlu0 0
        %1177 = vperm.xlu0 %1176, %v1097
        %v1178 = vpop.permute.xlu0 %1177
        %v1180 = vmul.f32 %v1103, %v1098
        %v1181 = vmul.f32 %v1108, %v1098
        %v1182 = vmul.f32 %v1113, %v1098
        %v1183 = vmul.f32 %v1118, %v1098
        %v1184 = vmul.f32 %v1123, %v1098
        %v1185 = vmul.f32 %v1128, %v1098
        %v1186 = vmul.f32 %v1133, %v1098
        %v1187 = vmul.f32 %v1138, %v1098
        %v1188 = vmul.f32 %v1143, %v1099
        %v1189 = vmul.f32 %v1148, %v1099
        %v1190 = vmul.f32 %v1153, %v1099
        %v1191 = vmul.f32 %v1158, %v1099
        %v1192 = vmul.f32 %v1163, %v1099
        %v1193 = vmul.f32 %v1168, %v1099
        %v1194 = vmul.f32 %v1173, %v1099
        %v1195 = vmul.f32 %v1178, %v1099
        %v1196 = vsel %vm601, %v1180, 0.0
        %v1197 = vrot.slane %v1196, 4
        %v1198 = vadd.f32 %v1196, %v1197
        %v1199 = vrot.slane %v1198, 2
        %v1200 = vadd.f32 %v1198, %v1199
        %v1201 = vrot.slane %v1200, 1
        %v1202 = vadd.f32 %v1200, %v1201
        %v1203 = vsel %vm601, %v1181, 0.0
        %v1204 = vrot.slane %v1203, 4
        %v1205 = vadd.f32 %v1203, %v1204
        %v1206 = vrot.slane %v1205, 2
        %v1207 = vadd.f32 %v1205, %v1206
        %v1208 = vrot.slane %v1207, 1
        %v1209 = vadd.f32 %v1207, %v1208
        %v1210 = vsel %vm601, %v1182, 0.0
        %v1211 = vrot.slane %v1210, 4
        %v1212 = vadd.f32 %v1210, %v1211
        %v1213 = vrot.slane %v1212, 2
        %v1214 = vadd.f32 %v1212, %v1213
        %v1215 = vrot.slane %v1214, 1
        %v1216 = vadd.f32 %v1214, %v1215
        %v1217 = vsel %vm601, %v1183, 0.0
        %v1218 = vrot.slane %v1217, 4
        %v1219 = vadd.f32 %v1217, %v1218
        %v1220 = vrot.slane %v1219, 2
        %v1221 = vadd.f32 %v1219, %v1220
        %v1222 = vrot.slane %v1221, 1
        %v1223 = vadd.f32 %v1221, %v1222
        %v1224 = vsel %vm601, %v1184, 0.0
        %v1225 = vrot.slane %v1224, 4
        %v1226 = vadd.f32 %v1224, %v1225
        %v1227 = vrot.slane %v1226, 2
        %v1228 = vadd.f32 %v1226, %v1227
        %v1229 = vrot.slane %v1228, 1
        %v1230 = vadd.f32 %v1228, %v1229
        %v1231 = vsel %vm601, %v1185, 0.0
        %v1232 = vrot.slane %v1231, 4
        %v1233 = vadd.f32 %v1231, %v1232
        %v1234 = vrot.slane %v1233, 2
        %v1235 = vadd.f32 %v1233, %v1234
        %v1236 = vrot.slane %v1235, 1
        %v1237 = vadd.f32 %v1235, %v1236
        %v1238 = vsel %vm601, %v1186, 0.0
        %v1239 = vrot.slane %v1238, 4
        %v1240 = vadd.f32 %v1238, %v1239
        %v1241 = vrot.slane %v1240, 2
        %v1242 = vadd.f32 %v1240, %v1241
        %v1243 = vrot.slane %v1242, 1
        %v1244 = vadd.f32 %v1242, %v1243
        %v1245 = vsel %vm601, %v1187, 0.0
        %v1246 = vrot.slane %v1245, 4
        %v1247 = vadd.f32 %v1245, %v1246
        %v1248 = vrot.slane %v1247, 2
        %v1249 = vadd.f32 %v1247, %v1248
        %v1250 = vrot.slane %v1249, 1
        %v1251 = vadd.f32 %v1249, %v1250
        %v1252 = vsel %vm601, %v1188, 0.0
        %v1253 = vrot.slane %v1252, 4
        %v1254 = vadd.f32 %v1252, %v1253
        %v1255 = vrot.slane %v1254, 2
        %v1256 = vadd.f32 %v1254, %v1255
        %v1257 = vrot.slane %v1256, 1
        %v1258 = vadd.f32 %v1256, %v1257
        %v1259 = vsel %vm601, %v1189, 0.0
        %v1260 = vrot.slane %v1259, 4
        %v1261 = vadd.f32 %v1259, %v1260
        %v1262 = vrot.slane %v1261, 2
        %v1263 = vadd.f32 %v1261, %v1262
        %v1264 = vrot.slane %v1263, 1
        %v1265 = vadd.f32 %v1263, %v1264
        %v1266 = vsel %vm601, %v1190, 0.0
        %v1267 = vrot.slane %v1266, 4
        %v1268 = vadd.f32 %v1266, %v1267
        %v1269 = vrot.slane %v1268, 2
        %v1270 = vadd.f32 %v1268, %v1269
        %v1271 = vrot.slane %v1270, 1
        %v1272 = vadd.f32 %v1270, %v1271
        %v1273 = vsel %vm601, %v1191, 0.0
        %v1274 = vrot.slane %v1273, 4
        %v1275 = vadd.f32 %v1273, %v1274
        %v1276 = vrot.slane %v1275, 2
        %v1277 = vadd.f32 %v1275, %v1276
        %v1278 = vrot.slane %v1277, 1
        %v1279 = vadd.f32 %v1277, %v1278
        %v1280 = vsel %vm601, %v1192, 0.0
        %v1281 = vrot.slane %v1280, 4
        %v1282 = vadd.f32 %v1280, %v1281
        %v1283 = vrot.slane %v1282, 2
        %v1284 = vadd.f32 %v1282, %v1283
        %v1285 = vrot.slane %v1284, 1
        %v1286 = vadd.f32 %v1284, %v1285
        %v1287 = vsel %vm601, %v1193, 0.0
        %v1288 = vrot.slane %v1287, 4
        %v1289 = vadd.f32 %v1287, %v1288
        %v1290 = vrot.slane %v1289, 2
        %v1291 = vadd.f32 %v1289, %v1290
        %v1292 = vrot.slane %v1291, 1
        %v1293 = vadd.f32 %v1291, %v1292
        %v1294 = vsel %vm601, %v1194, 0.0
        %v1295 = vrot.slane %v1294, 4
        %v1296 = vadd.f32 %v1294, %v1295
        %v1297 = vrot.slane %v1296, 2
        %v1298 = vadd.f32 %v1296, %v1297
        %v1299 = vrot.slane %v1298, 1
        %v1300 = vadd.f32 %v1298, %v1299
        %v1301 = vsel %vm601, %v1195, 0.0
        %v1302 = vrot.slane %v1301, 4
        %v1303 = vadd.f32 %v1301, %v1302
        %v1304 = vrot.slane %v1303, 2
        %v1305 = vadd.f32 %v1303, %v1304
        %v1306 = vrot.slane %v1305, 1
        %v1307 = vadd.f32 %v1305, %v1306
        %v1324 = vsel %vm960, %v1209, %v1202
        %v1325 = vsel %vm962, %v1216, %v1324
        %v1326 = vsel %vm964, %v1223, %v1325
        %v1327 = vsel %vm966, %v1230, %v1326
        %v1328 = vsel %vm968, %v1237, %v1327
        %v1329 = vsel %vm970, %v1244, %v1328
        %v1330 = vsel %vm972, %v1251, %v1329
        %v1331 = vsel %vm960, %v1265, %v1258
        %v1332 = vsel %vm962, %v1272, %v1331
        %v1333 = vsel %vm964, %v1279, %v1332
        %v1334 = vsel %vm966, %v1286, %v1333
        %v1335 = vsel %vm968, %v1293, %v1334
        %v1336 = vsel %vm970, %v1300, %v1335
        %v1337 = vsel %vm972, %v1307, %v1336
        %1340 = vst.msk [vmem:[%s385] sm:$0xff] %vm601, %v1330
        %1341 = vst.msk [vmem:[%s385 + $0x8] sm:$0xff] %vm601, %v1337
        %v1342 = vlaneseq
        %v1343 = vshrl.u32 %v1342, 7
        %v1344 = vsub.s32 %v895, %v1343
        %v1345 = vrot.slane %v1103, %v1344
        %v1346 = vlaneseq
        %v1347 = vshrl.u32 %v1346, 7
        %v1348 = vsub.s32 %v895, %v1347
        %v1349 = vrot.slane %v1108, %v1348
        %v1350 = vlaneseq
        %v1351 = vshrl.u32 %v1350, 7
        %v1352 = vsub.s32 %v895, %v1351
        %v1353 = vrot.slane %v1113, %v1352
        %v1354 = vlaneseq
        %v1355 = vshrl.u32 %v1354, 7
        %v1356 = vsub.s32 %v895, %v1355
        %v1357 = vrot.slane %v1118, %v1356
        %v1358 = vlaneseq
        %v1359 = vshrl.u32 %v1358, 7
        %v1360 = vsub.s32 %v895, %v1359
        %v1361 = vrot.slane %v1123, %v1360
        %v1362 = vlaneseq
        %v1363 = vshrl.u32 %v1362, 7
        %v1364 = vsub.s32 %v895, %v1363
        %v1365 = vrot.slane %v1128, %v1364
        %v1366 = vlaneseq
        %v1367 = vshrl.u32 %v1366, 7
        %v1368 = vsub.s32 %v895, %v1367
        %v1369 = vrot.slane %v1133, %v1368
        %v1370 = vlaneseq
        %v1371 = vshrl.u32 %v1370, 7
        %v1372 = vsub.s32 %v895, %v1371
        %v1373 = vrot.slane %v1138, %v1372
        %v1374 = vlaneseq
        %v1375 = vshrl.u32 %v1374, 7
        %v1376 = vsub.s32 %v895, %v1375
        %v1377 = vrot.slane %v1143, %v1376
        %v1378 = vlaneseq
        %v1379 = vshrl.u32 %v1378, 7
        %v1380 = vsub.s32 %v895, %v1379
        %v1381 = vrot.slane %v1148, %v1380
        %v1382 = vlaneseq
        %v1383 = vshrl.u32 %v1382, 7
        %v1384 = vsub.s32 %v895, %v1383
        %v1385 = vrot.slane %v1153, %v1384
        %v1386 = vlaneseq
        %v1387 = vshrl.u32 %v1386, 7
        %v1388 = vsub.s32 %v895, %v1387
        %v1389 = vrot.slane %v1158, %v1388
        %v1390 = vlaneseq
        %v1391 = vshrl.u32 %v1390, 7
        %v1392 = vsub.s32 %v895, %v1391
        %v1393 = vrot.slane %v1163, %v1392
        %v1394 = vlaneseq
        %v1395 = vshrl.u32 %v1394, 7
        %v1396 = vsub.s32 %v895, %v1395
        %v1397 = vrot.slane %v1168, %v1396
        %v1398 = vlaneseq
        %v1399 = vshrl.u32 %v1398, 7
        %v1400 = vsub.s32 %v895, %v1399
        %v1401 = vrot.slane %v1173, %v1400
        %v1402 = vlaneseq
        %v1403 = vshrl.u32 %v1402, 7
        %v1404 = vsub.s32 %v895, %v1403
        %v1405 = vrot.slane %v1178, %v1404
        %v1406 = vsel %vm960, %v1349, %v1345
        %v1407 = vsel %vm962, %v1353, %v1406
        %v1408 = vsel %vm964, %v1357, %v1407
        %v1409 = vsel %vm966, %v1361, %v1408
        %v1410 = vsel %vm968, %v1365, %v1409
        %v1411 = vsel %vm970, %v1369, %v1410
        %v1412 = vsel %vm972, %v1373, %v1411
        %v1413 = vsel %vm960, %v1381, %v1377
        %v1414 = vsel %vm962, %v1385, %v1413
        %v1415 = vsel %vm964, %v1389, %v1414
        %v1416 = vsel %vm966, %v1393, %v1415
        %v1417 = vsel %vm968, %v1397, %v1416
        %v1418 = vsel %vm970, %v1401, %v1417
        %v1419 = vsel %vm972, %v1405, %v1418
        %1422 = vst.msk [vmem:[%s392] sm:$0xff] %vm983, %v1412
        %1423 = vst.msk [vmem:[%s392 + $0x8] sm:$0xff] %vm983, %v1419
        %s1424 = sand.u32 %s162, 1
        %s1425 = scalar_lea.sflag [#allocation4], %s1424
        %s1426 = sand.u32 %s162, 1
        %s1427 = smul.addr %s1426, 16
        %s1428 = scalar_lea.vmem [#allocation10], %s1427
        %s1429 = sand.u32 %s190, 1
        %s1430 = scalar_lea.sflag [#allocation12], %s1429
        %s1431 = sand.u32 %s190, 1
        %s1432 = smul.addr %s1431, 16
        %s1433 = scalar_lea.vmem [#allocation11], %s1432
        // Predicated region
        $region53: #{tpu_custom_call.1} parent=35 // pred_check
          %p1434 = pneg %p172
        $region54: #{tpu_custom_call.1} parent=35 // pred_check_branch
          %1436 = sbr.rel (%p1434) target = $region56
        $region55: #{tpu_custom_call.1} parent=35 // pred_region
          %s1437 = smul.u32 2, %s36
          %s1439 = ssub.s32 256, 256
          %1440 = vsyncadd %s1425, %s1439
          %s1441 = sadd.s32 %s37, %s1437
          %s1442 = smul.addr %s1441, 128
          %s1443 = scalar_lea.hbm %s4, %s1442
          %s1444 = sshll.u32 %s1428, 4
          %s1445 = int_to_ptr.vmem [resolvable:$true] %s1444
          %1450 = dma.vmem_to_hbm [thread:$0]  %s1445, 256, %s1443, %s1425, 128, 128, 8
        $region56: #{tpu_custom_call.1} parent=35 // pred_fallthru
          _
        // Predicated region
        $region57: #{tpu_custom_call.1} parent=35 // pred_check
          %p1451 = pneg %p200
        $region58: #{tpu_custom_call.1} parent=35 // pred_check_branch
          %1453 = sbr.rel (%p1451) target = $region60
        $region59: #{tpu_custom_call.1} parent=35 // pred_region
          %s1454 = smul.u32 2, %s36
          %s1456 = ssub.s32 256, 256
          %1457 = vsyncadd %s1430, %s1456
          %s1458 = sadd.s32 %s37, %s1454
          %s1459 = smul.addr %s1458, 128
          %s1460 = scalar_lea.hbm %s5, %s1459
          %s1461 = sshll.u32 %s1433, 4
          %s1462 = int_to_ptr.vmem [resolvable:$true] %s1461
          %1467 = dma.vmem_to_hbm [thread:$0]  %s1462, 256, %s1460, %s1430, 128, 128, 8
        $region60: #{tpu_custom_call.1} parent=35 // pred_fallthru
          _
      $region36: #{tpu_custom_call.1} parent=5 // pred_fallthru
        _
      %p1468 = scmp.le.s32.totalorder 2, %s27
      // Predicated region
      $region61: #{tpu_custom_call.1} parent=5 // pred_check
        %p1469 = pneg %p1468
      $region62: #{tpu_custom_call.1} parent=5 // pred_check_branch
        %1471 = sbr.rel (%p1469) target = $region64
      $region63: #{tpu_custom_call.1} parent=5 // pred_region
        %s1472 = ssub.s32 %s27, 2
        // Predicated region
        $region65: #{tpu_custom_call.1} parent=63 // pred_check
          %p1473 = pneg %p178
        $region66: #{tpu_custom_call.1} parent=63 // pred_check_branch
          %1475 = sbr.rel (%p1473) target = $region68
        $region67: #{tpu_custom_call.1} parent=63 // pred_region
          %s1476 = sand.u32 %s163, 1
          %s1477 = scalar_lea.sflag [#allocation4], %s1476
          %s1478 = sand.u32 %s163, 1
          %s1479 = smul.addr %s1478, 16
          %s1480 = scalar_lea.vmem [#allocation10], %s1479
          %1481 = dma.done %s1477, 256
        $region68: #{tpu_custom_call.1} parent=63 // pred_fallthru
          _
        // Predicated region
        $region69: #{tpu_custom_call.1} parent=63 // pred_check
          %p1482 = pneg %p206
        $region70: #{tpu_custom_call.1} parent=63 // pred_check_branch
          %1484 = sbr.rel (%p1482) target = $region72
        $region71: #{tpu_custom_call.1} parent=63 // pred_region
          %s1485 = sand.u32 %s191, 1
          %s1486 = scalar_lea.sflag [#allocation12], %s1485
          %s1487 = sand.u32 %s191, 1
          %s1488 = smul.addr %s1487, 16
          %s1489 = scalar_lea.vmem [#allocation11], %s1488
          %1490 = dma.done %s1486, 256
        $region72: #{tpu_custom_call.1} parent=63 // pred_fallthru
          _
      $region64: #{tpu_custom_call.1} parent=5 // pred_fallthru
        _
    $region6: #{tpu_custom_call.1} parent=1 // loop_footer
      %s31 = sadd.s32 1, %s27
    $region7: #{tpu_custom_call.1} parent=1 // loop_footer_branch
      %26 = sbr.rel target = $region3
    $region8: #{tpu_custom_call.1} parent=1 // loop_exit
      _
    %1491 = vsyncpa [#allocation3], 1
    %s1492 = scalar_lea.sflag [#allocation3], 1
    %1493 = vsyncpa %s1492, 1
    %1494 = vsyncpa [#allocation6], 1
    %s1495 = scalar_lea.sflag [#allocation6], 1
    %1496 = vsyncpa %s1495, 1
    %1497 = vsyncpa [#allocation9], 1
    %s1498 = scalar_lea.sflag [#allocation9], 1
    %1499 = vsyncpa %s1498, 1
    %1500 = vsyncpa [#allocation4], 1
    %s1501 = scalar_lea.sflag [#allocation4], 1
    %1502 = vsyncpa %s1501, 1
    %1503 = vsyncpa [#allocation12], 1
    %s1504 = scalar_lea.sflag [#allocation12], 1
    %1505 = vsyncpa %s1504, 1

</llo_original>
